<compile_context>
chip_gen: v7x
topology: tpu7x:2x2x1
jax: 0.10.0
libtpu: 0.0.40
codegen_flags: <defaults>
</compile_context>

<pallas_src>
import functools

import jax
import jax.numpy as jnp
import numpy as np
from jax.experimental import pallas as pl
from jax.experimental.pallas import tpu as pltpu


def _fused_convscale_kernel(*args, H, W, nb, cins, couts):
    """Fused Conv3x3(+ReLU) chain over a block of `nb` images.

    args = (x_ref, T_0, bt_0, ..., T_{L-1}, bt_{L-1}, o_ref, slab_0[, slab_1])
      x_ref  : (nb, H, W*cins[0])          lane-dense input images
      T_l    : (3, W*cins[l], W*couts[l])  Toeplitz-packed weights (one per dy);
                                           zero-padding columns dropped.
      bt_l   : (1, W*couts[l])             bias tiled over W
      o_ref  : (nb, H, W*couts[-1])        lane-dense output
      slab_i : (nb*(H+2), width_i)         ping-pong zero-row-padded activation slabs
    """
    L = len(cins)
    x_ref = args[0]
    t_refs = [args[1 + 2 * i] for i in range(L)]
    b_refs = [args[2 + 2 * i] for i in range(L)]
    o_ref = args[1 + 2 * L]
    slab_refs = list(args[2 + 2 * L:])

    R = nb * (H + 2)   # slab rows: each image = 1 zero row + H data rows + 1 zero row
    M = R - 2          # matmul M; the rows straddling two images are discarded

    # Zero halo row strips: top of first image, bottom of last image, and one
    # 2-row strip between every pair of consecutive images.
    halo_rows = ([(0, 1)]
                 + [(j * (H + 2) + H + 1, 2) for j in range(nb - 1)]
                 + [(R - 1, 1)])

    # ---- layer-0 slab fill: interior data + border-only zeroing ----------------
    c0 = cins[0]
    w0 = W * c0
    s0 = slab_refs[0]
    for j in range(nb):
        r0 = j * (H + 2)
        s0[r0 + 1:r0 + 1 + H, 0:w0] = x_ref[j].astype(s0.dtype)
    for (r, n) in halo_rows:
        s0[r:r + n, 0:w0] = jnp.zeros((n, w0), s0.dtype)

    # ---- conv chain -------------------------------------------------------------
    for l in range(L):
        cin, cout = cins[l], couts[l]
        kin, wco = W * cin, W * cout
        s_in = slab_refs[l % 2]
        T = t_refs[l]

        # Three back-to-back MXU matmuls (one per kernel row dy); accumulator is
        # initialized from the first dot (no zero materialization / extra VPU add).
        acc = jnp.dot(s_in[0:M, 0:kin], T[0], preferred_element_type=jnp.float32)
        acc += jnp.dot(s_in[1:M + 1, 0:kin], T[1], preferred_element_type=jnp.float32)
        acc += jnp.dot(s_in[2:M + 2, 0:kin], T[2], preferred_element_type=jnp.float32)
        acc += b_refs[l][...]                       # (1, W*cout) broadcast over rows

        if l < L - 1:
            acc = jnp.maximum(acc, 0.0)             # fused inter-layer ReLU
            s_out = slab_refs[(l + 1) % 2]
            # Lane-aligned interior store (interior columns start at lane 0).
            # The `acc` rows that straddle two images land exactly on the
            # inter-image halo rows and are re-zeroed just below.
            s_out[1:M + 1, 0:wco] = acc.astype(s_out.dtype)
            for (r, n) in halo_rows:
                s_out[r:r + n, 0:wco] = jnp.zeros((n, wco), s_out.dtype)
        else:
            for j in range(nb):
                r0 = j * (H + 2)
                o_ref[j] = acc[r0:r0 + H].astype(o_ref.dtype)


def _pack_toeplitz(w, W):
    """(3, 3, Cin, Cout) conv weights -> (3, W*Cin, W*Cout) per-dy matrices.

    T[dy, xi*Cin + c, xo*Cout + o] = w[dy, xi - xo + 1, c, o] when |xi - xo| <= 1,
    else 0.  The zero-padding columns are dropped: with 'zeros' padding their
    activations are always 0 so they contribute nothing to the matmul, and
    dropping them keeps the slab interior lane-aligned at column 0.
    """
    KH, KW, Cin, Cout = w.shape
    T = jnp.zeros((KH, W, Cin, W, Cout), w.dtype)
    xi = np.arange(W)
    for dx in range(KW):
        xo = xi - dx + 1
        ok = (xo >= 0) & (xo < W)
        shift = np.zeros((W, W), np.float32)
        shift[xi[ok], xo[ok]] = 1.0
        T = T + jnp.einsum("ab,yco->yacbo", jnp.asarray(shift, w.dtype), w[:, dx])
    return T.reshape(KH, W * Cin, W * Cout)


def pack_convscale_params(params, W):
    """Pre-pack weights/biases once per weight set (kept out of the per-call path)."""
    packed = []
    for (w, b) in params:
        cout = w.shape[3]
        packed.append((
            _pack_toeplitz(w.astype(jnp.float32), W),
            jnp.tile(b.astype(jnp.float32), W).reshape(1, W * cout),
        ))
    return tuple(packed)


def _default_images_per_block(N):
    """Fold the whole batch into the matmul M dim on single-TC chips; keep one
    image per grid step ('parallel' megacore split) on multi-TC chips."""
    try:
        kind = jax.devices()[0].device_kind.lower()
    except Exception:
        kind = ""
    multi_tc = any(tag in kind for tag in ("v7", "7x", "v5p", "p5"))
    return 1 if multi_tc else N


@functools.partial(jax.jit, static_argnums=(2,))
def _convscale_forward_impl(x_nchw, packed_params, nb):
    N, C0, H, W = x_nchw.shape
    L = len(packed_params)
    cins = tuple(T.shape[1] // W for (T, _) in packed_params)
    couts = tuple(T.shape[2] // W for (T, _) in packed_params)
    assert cins[0] == C0 and N % nb == 0

    # Lane-dense kernel input: NCHW -> NHWC -> (N, H, W*C).
    x2 = jnp.transpose(x_nchw, (0, 2, 3, 1)).reshape(N, H, W * C0)

    # Two ping-pong activation slabs sized to the max layer width of each parity.
    R = nb * (H + 2)
    slab_widths = [0, 0]
    for l in range(L):
        slab_widths[l % 2] = max(slab_widths[l % 2], W * cins[l])
    scratch_shapes = [pltpu.VMEM((R, w_), jnp.float32) for w_ in slab_widths if w_ > 0]

    inputs = [x2]
    in_specs = [pl.BlockSpec((nb, H, W * C0), lambda g: (g, 0, 0))]
    for (T, bt) in packed_params:
        inputs.append(T)
        in_specs.append(pl.BlockSpec(T.shape, lambda g: (0, 0, 0)))   # grid-invariant
        inputs.append(bt)
        in_specs.append(pl.BlockSpec(bt.shape, lambda g: (0, 0)))     # grid-invariant

    kernel = functools.partial(_fused_convscale_kernel,
                               H=H, W=W, nb=nb, cins=cins, couts=couts)

    # Advisory cost estimate + explicit scoped-VMEM sizing.
    M = R - 2
    flops = (N // nb) * sum(2 * 3 * M * (W * ci) * (W * co)
                            for ci, co in zip(cins, couts))
    weight_bytes = sum(int(T.size) * T.dtype.itemsize + int(b.size) * b.dtype.itemsize
                       for (T, b) in packed_params)
    io_bytes = (int(x2.size) + N * H * W * couts[-1]) * 4
    cost = pl.CostEstimate(flops=int(flops), transcendentals=0,
                           bytes_accessed=int(weight_bytes + io_bytes))
    slab_bytes = sum(R * w_ * 4 for w_ in slab_widths)
    blk_bytes = nb * H * W * (cins[0] + couts[-1]) * 4
    vmem_limit = int(min(64 << 20,
                         max(16 << 20,
                             slab_bytes + 2 * (weight_bytes + blk_bytes) + (4 << 20))))

    out2 = pl.pallas_call(
        kernel,
        out_shape=jax.ShapeDtypeStruct((N, H, W * couts[-1]), x_nchw.dtype),
        grid_spec=pltpu.PrefetchScalarGridSpec(
            num_scalar_prefetch=0,
            grid=(N // nb,),
            in_specs=in_specs,
            out_specs=pl.BlockSpec((nb, H, W * couts[-1]), lambda g: (g, 0, 0)),
            scratch_shapes=scratch_shapes,
        ),
        compiler_params=pltpu.CompilerParams(
            dimension_semantics=("parallel",),
            vmem_limit_bytes=vmem_limit,
        ),
        cost_estimate=cost,
    )(*inputs)

    return jnp.transpose(out2.reshape(N, H, W, couts[-1]), (0, 3, 1, 2))


def convscale_flexible_forward(x_nchw, packed_params, images_per_block=None):
    """Forward pass of _ConvscaleFlexible (pad_method='zeros'). x_nchw: (N, C, H, W)."""
    N = x_nchw.shape[0]
    nb = images_per_block if images_per_block is not None else _default_images_per_block(N)
    nb = max(1, min(int(nb), N))
    while N % nb:
        nb -= 1
    return _convscale_forward_impl(x_nchw, packed_params, nb)


def init_convscale_params(key, data_channels, filters):
    """Deterministic init mimicking nn.Conv2d defaults (uniform +- 1/sqrt(fan_in)).

    Returns list of (w, b) with w: (3, 3, Cin, Cout), b: (Cout,).
    """
    params = []
    cins = [data_channels] + list(filters[:-1])
    for i, (cin, cout) in enumerate(zip(cins, filters)):
        kw, kb = jax.random.split(jax.random.fold_in(key, i))
        fan_in = cin * 3 * 3
        bound = 1.0 / np.sqrt(fan_in)
        w = jax.random.uniform(kw, (3, 3, cin, cout), jnp.float32, -bound, bound)
        b = jax.random.uniform(kb, (cout,), jnp.float32, -bound, bound)
        params.append((w, b))
    return params


def _reference_forward(x_nchw, params):
    """Pure-JAX reference (lax conv) for a correctness sanity check."""
    x = x_nchw
    n_layers = len(params)
    for i, (w, b) in enumerate(params):
        w_oihw = jnp.transpose(w, (3, 2, 0, 1))  # (3,3,Cin,Cout) -> (Cout,Cin,3,3)
        x = jax.lax.conv_general_dilated(
            x, w_oihw, window_strides=(1, 1), padding=((1, 1), (1, 1)),
            dimension_numbers=("NCHW", "OIHW", "NCHW"),
        ) + b.reshape(1, -1, 1, 1)
        if i < n_layers - 1:
            x = jnp.maximum(x, 0.0)
    return x


if __name__ == "__main__":
    key = jax.random.PRNGKey(0)

    # Small shapes consistent with the module: batch=2, data_channels=4, 16x16 images.
    N, data_channels, H, W = 2, 4, 16, 16
    filters = [8, 16, 8]  # pad_method = 'zeros' (nn.Conv2d default)

    kx, kp = jax.random.split(key)
    x = jax.random.normal(kx, (N, data_channels, H, W), jnp.float32)
    params = init_convscale_params(kp, data_channels, filters)
    packed = pack_convscale_params(params, W)   # one-time weight packing

    out = convscale_flexible_forward(x, packed)
    out = jax.block_until_ready(out)

    ref = _reference_forward(x, params)
    assert out.shape == (N, filters[-1], H, W)
    np.testing.assert_allclose(np.asarray(out), np.asarray(ref), rtol=1e-4, atol=1e-4)

    print("KERNEL_OK")
</pallas_src>

<mosaic_0001>
module attributes {stable_mosaic.version = 11 : i64} {
  func.func @_fused_convscale_kernel(%arg0: i32, %arg1: memref<2x16x64xf32, #tpu.memory_space<vmem>>, %arg2: memref<3x64x128xf32, #tpu.memory_space<vmem>>, %arg3: memref<1x128xf32, #tpu.memory_space<vmem>>, %arg4: memref<3x128x256xf32, #tpu.memory_space<vmem>>, %arg5: memref<1x256xf32, #tpu.memory_space<vmem>>, %arg6: memref<3x256x128xf32, #tpu.memory_space<vmem>>, %arg7: memref<1x128xf32, #tpu.memory_space<vmem>>, %arg8: memref<2x16x128xf32, #tpu.memory_space<vmem>>, %arg9: memref<36x256xf32, #tpu.memory_space<vmem>>, %arg10: memref<36x128xf32, #tpu.memory_space<vmem>>) attributes {dimension_semantics = [#tpu.dimension_semantics<parallel>], iteration_bounds = array<i64: 1>, scalar_prefetch = 0 : i64, scratch_operands = 2 : i64, tpu.core_type = #tpu.core_type<tc>, window_params = [{transform_indices = @transform_0, window_bounds = array<i64: 2, 16, 64>}, {pipeline_mode = #tpu.pipeline_mode<synchronous>, transform_indices = @transform_1, window_bounds = array<i64: 3, 64, 128>}, {pipeline_mode = #tpu.pipeline_mode<synchronous>, transform_indices = @transform_2, window_bounds = array<i64: 1, 128>}, {pipeline_mode = #tpu.pipeline_mode<synchronous>, transform_indices = @transform_3, window_bounds = array<i64: 3, 128, 256>}, {pipeline_mode = #tpu.pipeline_mode<synchronous>, transform_indices = @transform_4, window_bounds = array<i64: 1, 256>}, {pipeline_mode = #tpu.pipeline_mode<synchronous>, transform_indices = @transform_5, window_bounds = array<i64: 3, 256, 128>}, {pipeline_mode = #tpu.pipeline_mode<synchronous>, transform_indices = @transform_6, window_bounds = array<i64: 1, 128>}, {transform_indices = @transform_7, window_bounds = array<i64: 2, 16, 128>}]} {
    %c0 = arith.constant 0 : index
    %c0_0 = arith.constant 0 : index
    %c0_1 = arith.constant 0 : index
    %0 = vector.load %arg1[%c0, %c0_0, %c0_1] : memref<2x16x64xf32, #tpu.memory_space<vmem>>, vector<1x16x64xf32>
    %1 = vector.shape_cast %0 : vector<1x16x64xf32> to vector<16x64xf32>
    %c1 = arith.constant 1 : index
    %c0_2 = arith.constant 0 : index
    %2 = vector.load %arg9[%c1, %c0_2] : memref<36x256xf32, #tpu.memory_space<vmem>>, vector<16x64xf32>
    tpu.vector_store %arg9[%c1, %c0_2], %1 {strides = array<i32>} : memref<36x256xf32, #tpu.memory_space<vmem>>, vector<16x64xf32>,
    %c1_3 = arith.constant 1 : index
    %c0_4 = arith.constant 0 : index
    %c0_5 = arith.constant 0 : index
    %3 = vector.load %arg1[%c1_3, %c0_4, %c0_5] : memref<2x16x64xf32, #tpu.memory_space<vmem>>, vector<1x16x64xf32>
    %4 = vector.shape_cast %3 : vector<1x16x64xf32> to vector<16x64xf32>
    %c19 = arith.constant 19 : index
    %c0_6 = arith.constant 0 : index
    %5 = vector.load %arg9[%c19, %c0_6] : memref<36x256xf32, #tpu.memory_space<vmem>>, vector<16x64xf32>
    tpu.vector_store %arg9[%c19, %c0_6], %4 {strides = array<i32>} : memref<36x256xf32, #tpu.memory_space<vmem>>, vector<16x64xf32>,
    %cst = arith.constant 0.000000e+00 : f32
    %6 = vector.broadcast %cst : f32 to vector<1x64xf32>
    %c0_7 = arith.constant 0 : index
    %c0_8 = arith.constant 0 : index
    %7 = vector.load %arg9[%c0_7, %c0_8] : memref<36x256xf32, #tpu.memory_space<vmem>>, vector<1x64xf32>
    tpu.vector_store %arg9[%c0_7, %c0_8], %6 {strides = array<i32>} : memref<36x256xf32, #tpu.memory_space<vmem>>, vector<1x64xf32>,
    %cst_9 = arith.constant 0.000000e+00 : f32
    %8 = vector.broadcast %cst_9 : f32 to vector<2x64xf32>
    %c17 = arith.constant 17 : index
    %c0_10 = arith.constant 0 : index
    %9 = vector.load %arg9[%c17, %c0_10] : memref<36x256xf32, #tpu.memory_space<vmem>>, vector<2x64xf32>
    tpu.vector_store %arg9[%c17, %c0_10], %8 {strides = array<i32>} : memref<36x256xf32, #tpu.memory_space<vmem>>, vector<2x64xf32>,
    %cst_11 = arith.constant 0.000000e+00 : f32
    %10 = vector.broadcast %cst_11 : f32 to vector<1x64xf32>
    %c35 = arith.constant 35 : index
    %c0_12 = arith.constant 0 : index
    %11 = vector.load %arg9[%c35, %c0_12] : memref<36x256xf32, #tpu.memory_space<vmem>>, vector<1x64xf32>
    tpu.vector_store %arg9[%c35, %c0_12], %10 {strides = array<i32>} : memref<36x256xf32, #tpu.memory_space<vmem>>, vector<1x64xf32>,
    %c0_13 = arith.constant 0 : index
    %c0_14 = arith.constant 0 : index
    %12 = vector.load %arg9[%c0_13, %c0_14] : memref<36x256xf32, #tpu.memory_space<vmem>>, vector<34x64xf32>
    %c0_15 = arith.constant 0 : index
    %c0_16 = arith.constant 0 : index
    %c0_17 = arith.constant 0 : index
    %13 = vector.load %arg2[%c0_15, %c0_16, %c0_17] : memref<3x64x128xf32, #tpu.memory_space<vmem>>, vector<1x64x128xf32>
    %14 = vector.shape_cast %13 : vector<1x64x128xf32> to vector<64x128xf32>
    %cst_18 = arith.constant dense<0.000000e+00> : vector<34x128xf32>
    %15 = tpu.matmul %12, %14, %cst_18 {dimension_numbers = #tpu.dot_dimension_numbers<[1], [0], [0], [1], [0, 0, 1, 1], [], []>} : vector<34x64xf32>, vector<64x128xf32>, vector<34x128xf32> -> vector<34x128xf32>
    %c1_19 = arith.constant 1 : index
    %c0_20 = arith.constant 0 : index
    %16 = vector.load %arg9[%c1_19, %c0_20] : memref<36x256xf32, #tpu.memory_space<vmem>>, vector<34x64xf32>
    %c1_21 = arith.constant 1 : index
    %c0_22 = arith.constant 0 : index
    %c0_23 = arith.constant 0 : index
    %17 = vector.load %arg2[%c1_21, %c0_22, %c0_23] : memref<3x64x128xf32, #tpu.memory_space<vmem>>, vector<1x64x128xf32>
    %18 = vector.shape_cast %17 : vector<1x64x128xf32> to vector<64x128xf32>
    %cst_24 = arith.constant dense<0.000000e+00> : vector<34x128xf32>
    %19 = tpu.matmul %16, %18, %cst_24 {dimension_numbers = #tpu.dot_dimension_numbers<[1], [0], [0], [1], [0, 0, 1, 1], [], []>} : vector<34x64xf32>, vector<64x128xf32>, vector<34x128xf32> -> vector<34x128xf32>
    %20 = arith.addf %15, %19 : vector<34x128xf32>
    %c2 = arith.constant 2 : index
    %c0_25 = arith.constant 0 : index
    %21 = vector.load %arg9[%c2, %c0_25] : memref<36x256xf32, #tpu.memory_space<vmem>>, vector<34x64xf32>
    %c2_26 = arith.constant 2 : index
    %c0_27 = arith.constant 0 : index
    %c0_28 = arith.constant 0 : index
    %22 = vector.load %arg2[%c2_26, %c0_27, %c0_28] : memref<3x64x128xf32, #tpu.memory_space<vmem>>, vector<1x64x128xf32>
    %23 = vector.shape_cast %22 : vector<1x64x128xf32> to vector<64x128xf32>
    %cst_29 = arith.constant dense<0.000000e+00> : vector<34x128xf32>
    %24 = tpu.matmul %21, %23, %cst_29 {dimension_numbers = #tpu.dot_dimension_numbers<[1], [0], [0], [1], [0, 0, 1, 1], [], []>} : vector<34x64xf32>, vector<64x128xf32>, vector<34x128xf32> -> vector<34x128xf32>
    %25 = arith.addf %20, %24 : vector<34x128xf32>
    %c0_30 = arith.constant 0 : index
    %c0_31 = arith.constant 0 : index
    %26 = vector.load %arg3[%c0_30, %c0_31] : memref<1x128xf32, #tpu.memory_space<vmem>>, vector<1x128xf32>
    %27 = vector.broadcast %26 : vector<1x128xf32> to vector<34x128xf32>
    %28 = arith.addf %25, %27 : vector<34x128xf32>
    %cst_32 = arith.constant 0.000000e+00 : f32
    %29 = vector.broadcast %cst_32 : f32 to vector<34x128xf32>
    %30 = arith.maximumf %28, %29 : vector<34x128xf32>
    %c1_33 = arith.constant 1 : index
    %c0_34 = arith.constant 0 : index
    %31 = vector.load %arg10[%c1_33, %c0_34] : memref<36x128xf32, #tpu.memory_space<vmem>>, vector<34x128xf32>
    tpu.vector_store %arg10[%c1_33, %c0_34], %30 {strides = array<i32>} : memref<36x128xf32, #tpu.memory_space<vmem>>, vector<34x128xf32>,
    %cst_35 = arith.constant 0.000000e+00 : f32
    %32 = vector.broadcast %cst_35 : f32 to vector<1x128xf32>
    %c0_36 = arith.constant 0 : index
    %c0_37 = arith.constant 0 : index
    %33 = vector.load %arg10[%c0_36, %c0_37] : memref<36x128xf32, #tpu.memory_space<vmem>>, vector<1x128xf32>
    tpu.vector_store %arg10[%c0_36, %c0_37], %32 {strides = array<i32>} : memref<36x128xf32, #tpu.memory_space<vmem>>, vector<1x128xf32>,
    %cst_38 = arith.constant 0.000000e+00 : f32
    %34 = vector.broadcast %cst_38 : f32 to vector<2x128xf32>
    %c17_39 = arith.constant 17 : index
    %c0_40 = arith.constant 0 : index
    %35 = vector.load %arg10[%c17_39, %c0_40] : memref<36x128xf32, #tpu.memory_space<vmem>>, vector<2x128xf32>
    tpu.vector_store %arg10[%c17_39, %c0_40], %34 {strides = array<i32>} : memref<36x128xf32, #tpu.memory_space<vmem>>, vector<2x128xf32>,
    %cst_41 = arith.constant 0.000000e+00 : f32
    %36 = vector.broadcast %cst_41 : f32 to vector<1x128xf32>
    %c35_42 = arith.constant 35 : index
    %c0_43 = arith.constant 0 : index
    %37 = vector.load %arg10[%c35_42, %c0_43] : memref<36x128xf32, #tpu.memory_space<vmem>>, vector<1x128xf32>
    tpu.vector_store %arg10[%c35_42, %c0_43], %36 {strides = array<i32>} : memref<36x128xf32, #tpu.memory_space<vmem>>, vector<1x128xf32>,
    %c0_44 = arith.constant 0 : index
    %c0_45 = arith.constant 0 : index
    %38 = vector.load %arg10[%c0_44, %c0_45] : memref<36x128xf32, #tpu.memory_space<vmem>>, vector<34x128xf32>
    %c0_46 = arith.constant 0 : index
    %c0_47 = arith.constant 0 : index
    %c0_48 = arith.constant 0 : index
    %39 = vector.load %arg4[%c0_46, %c0_47, %c0_48] : memref<3x128x256xf32, #tpu.memory_space<vmem>>, vector<1x128x256xf32>
    %40 = vector.shape_cast %39 : vector<1x128x256xf32> to vector<128x256xf32>
    %cst_49 = arith.constant dense<0.000000e+00> : vector<34x256xf32>
    %41 = tpu.matmul %38, %40, %cst_49 {dimension_numbers = #tpu.dot_dimension_numbers<[1], [0], [0], [1], [0, 0, 1, 1], [], []>} : vector<34x128xf32>, vector<128x256xf32>, vector<34x256xf32> -> vector<34x256xf32>
    %c1_50 = arith.constant 1 : index
    %c0_51 = arith.constant 0 : index
    %42 = vector.load %arg10[%c1_50, %c0_51] : memref<36x128xf32, #tpu.memory_space<vmem>>, vector<34x128xf32>
    %c1_52 = arith.constant 1 : index
    %c0_53 = arith.constant 0 : index
    %c0_54 = arith.constant 0 : index
    %43 = vector.load %arg4[%c1_52, %c0_53, %c0_54] : memref<3x128x256xf32, #tpu.memory_space<vmem>>, vector<1x128x256xf32>
    %44 = vector.shape_cast %43 : vector<1x128x256xf32> to vector<128x256xf32>
    %cst_55 = arith.constant dense<0.000000e+00> : vector<34x256xf32>
    %45 = tpu.matmul %42, %44, %cst_55 {dimension_numbers = #tpu.dot_dimension_numbers<[1], [0], [0], [1], [0, 0, 1, 1], [], []>} : vector<34x128xf32>, vector<128x256xf32>, vector<34x256xf32> -> vector<34x256xf32>
    %46 = arith.addf %41, %45 : vector<34x256xf32>
    %c2_56 = arith.constant 2 : index
    %c0_57 = arith.constant 0 : index
    %47 = vector.load %arg10[%c2_56, %c0_57] : memref<36x128xf32, #tpu.memory_space<vmem>>, vector<34x128xf32>
    %c2_58 = arith.constant 2 : index
    %c0_59 = arith.constant 0 : index
    %c0_60 = arith.constant 0 : index
    %48 = vector.load %arg4[%c2_58, %c0_59, %c0_60] : memref<3x128x256xf32, #tpu.memory_space<vmem>>, vector<1x128x256xf32>
    %49 = vector.shape_cast %48 : vector<1x128x256xf32> to vector<128x256xf32>
    %cst_61 = arith.constant dense<0.000000e+00> : vector<34x256xf32>
    %50 = tpu.matmul %47, %49, %cst_61 {dimension_numbers = #tpu.dot_dimension_numbers<[1], [0], [0], [1], [0, 0, 1, 1], [], []>} : vector<34x128xf32>, vector<128x256xf32>, vector<34x256xf32> -> vector<34x256xf32>
    %51 = arith.addf %46, %50 : vector<34x256xf32>
    %c0_62 = arith.constant 0 : index
    %c0_63 = arith.constant 0 : index
    %52 = vector.load %arg5[%c0_62, %c0_63] : memref<1x256xf32, #tpu.memory_space<vmem>>, vector<1x256xf32>
    %53 = vector.broadcast %52 : vector<1x256xf32> to vector<34x256xf32>
    %54 = arith.addf %51, %53 : vector<34x256xf32>
    %cst_64 = arith.constant 0.000000e+00 : f32
    %55 = vector.broadcast %cst_64 : f32 to vector<34x256xf32>
    %56 = arith.maximumf %54, %55 : vector<34x256xf32>
    %c1_65 = arith.constant 1 : index
    %c0_66 = arith.constant 0 : index
    %57 = vector.load %arg9[%c1_65, %c0_66] : memref<36x256xf32, #tpu.memory_space<vmem>>, vector<34x256xf32>
    tpu.vector_store %arg9[%c1_65, %c0_66], %56 {strides = array<i32>} : memref<36x256xf32, #tpu.memory_space<vmem>>, vector<34x256xf32>,
    %cst_67 = arith.constant 0.000000e+00 : f32
    %58 = vector.broadcast %cst_67 : f32 to vector<1x256xf32>
    %c0_68 = arith.constant 0 : index
    %c0_69 = arith.constant 0 : index
    %59 = vector.load %arg9[%c0_68, %c0_69] : memref<36x256xf32, #tpu.memory_space<vmem>>, vector<1x256xf32>
    tpu.vector_store %arg9[%c0_68, %c0_69], %58 {strides = array<i32>} : memref<36x256xf32, #tpu.memory_space<vmem>>, vector<1x256xf32>,
    %cst_70 = arith.constant 0.000000e+00 : f32
    %60 = vector.broadcast %cst_70 : f32 to vector<2x256xf32>
    %c17_71 = arith.constant 17 : index
    %c0_72 = arith.constant 0 : index
    %61 = vector.load %arg9[%c17_71, %c0_72] : memref<36x256xf32, #tpu.memory_space<vmem>>, vector<2x256xf32>
    tpu.vector_store %arg9[%c17_71, %c0_72], %60 {strides = array<i32>} : memref<36x256xf32, #tpu.memory_space<vmem>>, vector<2x256xf32>,
    %cst_73 = arith.constant 0.000000e+00 : f32
    %62 = vector.broadcast %cst_73 : f32 to vector<1x256xf32>
    %c35_74 = arith.constant 35 : index
    %c0_75 = arith.constant 0 : index
    %63 = vector.load %arg9[%c35_74, %c0_75] : memref<36x256xf32, #tpu.memory_space<vmem>>, vector<1x256xf32>
    tpu.vector_store %arg9[%c35_74, %c0_75], %62 {strides = array<i32>} : memref<36x256xf32, #tpu.memory_space<vmem>>, vector<1x256xf32>,
    %c0_76 = arith.constant 0 : index
    %c0_77 = arith.constant 0 : index
    %64 = vector.load %arg9[%c0_76, %c0_77] : memref<36x256xf32, #tpu.memory_space<vmem>>, vector<34x256xf32>
    %c0_78 = arith.constant 0 : index
    %c0_79 = arith.constant 0 : index
    %c0_80 = arith.constant 0 : index
    %65 = vector.load %arg6[%c0_78, %c0_79, %c0_80] : memref<3x256x128xf32, #tpu.memory_space<vmem>>, vector<1x256x128xf32>
    %66 = vector.shape_cast %65 : vector<1x256x128xf32> to vector<256x128xf32>
    %cst_81 = arith.constant dense<0.000000e+00> : vector<34x128xf32>
    %67 = tpu.matmul %64, %66, %cst_81 {dimension_numbers = #tpu.dot_dimension_numbers<[1], [0], [0], [1], [0, 0, 1, 1], [], []>} : vector<34x256xf32>, vector<256x128xf32>, vector<34x128xf32> -> vector<34x128xf32>
    %c1_82 = arith.constant 1 : index
    %c0_83 = arith.constant 0 : index
    %68 = vector.load %arg9[%c1_82, %c0_83] : memref<36x256xf32, #tpu.memory_space<vmem>>, vector<34x256xf32>
    %c1_84 = arith.constant 1 : index
    %c0_85 = arith.constant 0 : index
    %c0_86 = arith.constant 0 : index
    %69 = vector.load %arg6[%c1_84, %c0_85, %c0_86] : memref<3x256x128xf32, #tpu.memory_space<vmem>>, vector<1x256x128xf32>
    %70 = vector.shape_cast %69 : vector<1x256x128xf32> to vector<256x128xf32>
    %cst_87 = arith.constant dense<0.000000e+00> : vector<34x128xf32>
    %71 = tpu.matmul %68, %70, %cst_87 {dimension_numbers = #tpu.dot_dimension_numbers<[1], [0], [0], [1], [0, 0, 1, 1], [], []>} : vector<34x256xf32>, vector<256x128xf32>, vector<34x128xf32> -> vector<34x128xf32>
    %72 = arith.addf %67, %71 : vector<34x128xf32>
    %c2_88 = arith.constant 2 : index
    %c0_89 = arith.constant 0 : index
    %73 = vector.load %arg9[%c2_88, %c0_89] : memref<36x256xf32, #tpu.memory_space<vmem>>, vector<34x256xf32>
    %c2_90 = arith.constant 2 : index
    %c0_91 = arith.constant 0 : index
    %c0_92 = arith.constant 0 : index
    %74 = vector.load %arg6[%c2_90, %c0_91, %c0_92] : memref<3x256x128xf32, #tpu.memory_space<vmem>>, vector<1x256x128xf32>
    %75 = vector.shape_cast %74 : vector<1x256x128xf32> to vector<256x128xf32>
    %cst_93 = arith.constant dense<0.000000e+00> : vector<34x128xf32>
    %76 = tpu.matmul %73, %75, %cst_93 {dimension_numbers = #tpu.dot_dimension_numbers<[1], [0], [0], [1], [0, 0, 1, 1], [], []>} : vector<34x256xf32>, vector<256x128xf32>, vector<34x128xf32> -> vector<34x128xf32>
    %77 = arith.addf %72, %76 : vector<34x128xf32>
    %c0_94 = arith.constant 0 : index
    %c0_95 = arith.constant 0 : index
    %78 = vector.load %arg7[%c0_94, %c0_95] : memref<1x128xf32, #tpu.memory_space<vmem>>, vector<1x128xf32>
    %79 = vector.broadcast %78 : vector<1x128xf32> to vector<34x128xf32>
    %80 = arith.addf %77, %79 : vector<34x128xf32>
    %81 = vector.extract_strided_slice %80 {offsets = [0, 0], sizes = [16, 128], strides = [1, 1]} : vector<34x128xf32> to vector<16x128xf32>
    %c0_96 = arith.constant 0 : index
    %c0_97 = arith.constant 0 : index
    %c0_98 = arith.constant 0 : index
    %82 = vector.load %arg8[%c0_96, %c0_97, %c0_98] : memref<2x16x128xf32, #tpu.memory_space<vmem>>, vector<1x16x128xf32>
    %83 = vector.shape_cast %82 : vector<1x16x128xf32> to vector<16x128xf32>
    %84 = vector.shape_cast %81 : vector<16x128xf32> to vector<1x16x128xf32>
    tpu.vector_store %arg8[%c0_96, %c0_97, %c0_98], %84 {strides = array<i32>} : memref<2x16x128xf32, #tpu.memory_space<vmem>>, vector<1x16x128xf32>,
    %85 = vector.extract_strided_slice %80 {offsets = [18, 0], sizes = [16, 128], strides = [1, 1]} : vector<34x128xf32> to vector<16x128xf32>
    %c1_99 = arith.constant 1 : index
    %c0_100 = arith.constant 0 : index
    %c0_101 = arith.constant 0 : index
    %86 = vector.load %arg8[%c1_99, %c0_100, %c0_101] : memref<2x16x128xf32, #tpu.memory_space<vmem>>, vector<1x16x128xf32>
    %87 = vector.shape_cast %86 : vector<1x16x128xf32> to vector<16x128xf32>
    %88 = vector.shape_cast %85 : vector<16x128xf32> to vector<1x16x128xf32>
    tpu.vector_store %arg8[%c1_99, %c0_100, %c0_101], %88 {strides = array<i32>} : memref<2x16x128xf32, #tpu.memory_space<vmem>>, vector<1x16x128xf32>,
    return
  }
  func.func @transform_0(%arg0: i32) -> (i32, i32, i32) {
    %c0_i32 = arith.constant 0 : i32
    %c0_i32_0 = arith.constant 0 : i32
    %c0_i32_1 = arith.constant 0 : i32
    return %arg0, %c0_i32, %c0_i32_0 : i32, i32, i32
  }
  func.func @transform_1(%arg0: i32) -> (i32, i32, i32) {
    %c0_i32 = arith.constant 0 : i32
    %c0_i32_0 = arith.constant 0 : i32
    %c0_i32_1 = arith.constant 0 : i32
    %c0_i32_2 = arith.constant 0 : i32
    return %c0_i32, %c0_i32_0, %c0_i32_1 : i32, i32, i32
  }
  func.func @transform_2(%arg0: i32) -> (i32, i32) {
    %c0_i32 = arith.constant 0 : i32
    %c0_i32_0 = arith.constant 0 : i32
    %c0_i32_1 = arith.constant 0 : i32
    return %c0_i32, %c0_i32_0 : i32, i32
  }
  func.func @transform_3(%arg0: i32) -> (i32, i32, i32) {
    %c0_i32 = arith.constant 0 : i32
    %c0_i32_0 = arith.constant 0 : i32
    %c0_i32_1 = arith.constant 0 : i32
    %c0_i32_2 = arith.constant 0 : i32
    return %c0_i32, %c0_i32_0, %c0_i32_1 : i32, i32, i32
  }
  func.func @transform_4(%arg0: i32) -> (i32, i32) {
    %c0_i32 = arith.constant 0 : i32
    %c0_i32_0 = arith.constant 0 : i32
    %c0_i32_1 = arith.constant 0 : i32
    return %c0_i32, %c0_i32_0 : i32, i32
  }
  func.func @transform_5(%arg0: i32) -> (i32, i32, i32) {
    %c0_i32 = arith.constant 0 : i32
    %c0_i32_0 = arith.constant 0 : i32
    %c0_i32_1 = arith.constant 0 : i32
    %c0_i32_2 = arith.constant 0 : i32
    return %c0_i32, %c0_i32_0, %c0_i32_1 : i32, i32, i32
  }
  func.func @transform_6(%arg0: i32) -> (i32, i32) {
    %c0_i32 = arith.constant 0 : i32
    %c0_i32_0 = arith.constant 0 : i32
    %c0_i32_1 = arith.constant 0 : i32
    return %c0_i32, %c0_i32_0 : i32, i32
  }
  func.func @transform_7(%arg0: i32) -> (i32, i32, i32) {
    %c0_i32 = arith.constant 0 : i32
    %c0_i32_0 = arith.constant 0 : i32
    %c0_i32_1 = arith.constant 0 : i32
    return %arg0, %c0_i32, %c0_i32_0 : i32, i32, i32
  }
}

</mosaic_0001>

<llo_original>
// kernel: _convscale_forward_impl.1
$region0: #{_convscale_forward_impl.1}
  #allocation0 [shape = 'u32[]', space=smem, size = 0x4, offset = 0x4, fixed_abs, tag = 'smem constant byte address 0x4 - core index']
  #allocation1 [shape = 'u32[144,128]{1,0:T(1,128)}', space=vmem, size = 0x12000, scoped, tag = 'internal scratch']
  #allocation2 [shape = 'f32[36,256]{1,0:T(8,128)}', space=vmem, size = 0xa000, scoped, tag = 'scratch operand']
  #allocation3 [shape = 'f32[36,128]{1,0:T(8,128)}', space=vmem, size = 0x5000, scoped, tag = 'scratch operand']
  %s0 = inlined_call_operand.vmem [shape: f32[2,16,64], index: 0, kind: input, shape index: {}]
  %s1 = inlined_call_operand.vmem [shape: f32[3,64,128], index: 1, kind: input, shape index: {}]
  %s2 = inlined_call_operand.vmem [shape: f32[1,128], index: 2, kind: input, shape index: {}]
  %s3 = inlined_call_operand.hbm [shape: f32[3,128,256], index: 3, kind: input, shape index: {}]
  %s4 = inlined_call_operand.vmem [shape: f32[1,256], index: 4, kind: input, shape index: {}]
  %s5 = inlined_call_operand.hbm [shape: f32[3,256,128], index: 5, kind: input, shape index: {}]
  %s6 = inlined_call_operand.vmem [shape: f32[1,128], index: 6, kind: input, shape index: {}]
  %s7 = inlined_call_operand.vmem [shape: f32[2,16,128], index: 7, kind: output, shape index: {}]
  %s8 = sld [smem:[#allocation0]]
  $region46: #{_convscale_forward_impl.1} parent=0
    _
  %s10 = ssub.s32 1, %s8
  %s11 = scalar_select 0, %s10, %s8
  $region1: #{_convscale_forward_impl.1} parent=0
    #allocation4 [shape = 'u8[393216]{0}', space=vmem, size = 0x60000, scoped, tag = 'input window, operand 3, single buffered']
    #allocation5 [shape = 's32[1]{0}', space=sflag, size = 0x4, scoped, tag = 'scoped memory for _convscale_forward_impl.1']
    #allocation6 [shape = 'u8[393216]{0}', space=vmem, size = 0x60000, scoped, tag = 'input window, operand 5, single buffered']
    #allocation7 [shape = 's32[1]{0}', space=sflag, size = 0x4, scoped, tag = 'scoped memory for _convscale_forward_impl.1']
    %12 = vsyncpa [#allocation5], 0
    %13 = vsyncpa [#allocation7], 0
    // Predicated region
    $region2: #{_convscale_forward_impl.1} parent=1 // pred_check
      _
    $region3: #{_convscale_forward_impl.1} parent=1 // pred_check_branch
      %15 = sbr.rel (0) target = $region5
    $region4: #{_convscale_forward_impl.1} parent=1 // pred_region
      _
    $region5: #{_convscale_forward_impl.1} parent=1 // pred_fallthru
      _
    // Predicated region
    $region6: #{_convscale_forward_impl.1} parent=1 // pred_check
      _
    $region7: #{_convscale_forward_impl.1} parent=1 // pred_check_branch
      %17 = sbr.rel (0) target = $region9
    $region8: #{_convscale_forward_impl.1} parent=1 // pred_region
      _
    $region9: #{_convscale_forward_impl.1} parent=1 // pred_fallthru
      _
    // Predicated region
    $region10: #{_convscale_forward_impl.1} parent=1 // pred_check
      _
    $region11: #{_convscale_forward_impl.1} parent=1 // pred_check_branch
      %19 = sbr.rel (0) target = $region13
    $region12: #{_convscale_forward_impl.1} parent=1 // pred_region
      _
    $region13: #{_convscale_forward_impl.1} parent=1 // pred_fallthru
      _
    // Predicated region
    $region14: #{_convscale_forward_impl.1} parent=1 // pred_check
      _
    $region15: #{_convscale_forward_impl.1} parent=1 // pred_check_branch
      %21 = sbr.rel (0) target = $region17
    $region16: #{_convscale_forward_impl.1} parent=1 // pred_region
      %s23 = ssub.s32 12288, 12288
      %24 = vsyncadd [#allocation5], %s23
      %s25 = sshll.u32 [#allocation4], 4
      %s26 = int_to_ptr.vmem [resolvable:$true] %s25
      %31 = dma.hbm_to_vmem [thread:$0]  %s3, 12288, %s26, [#allocation5], 256, 256, 16
    $region17: #{_convscale_forward_impl.1} parent=1 // pred_fallthru
      _
    // Predicated region
    $region18: #{_convscale_forward_impl.1} parent=1 // pred_check
      _
    $region19: #{_convscale_forward_impl.1} parent=1 // pred_check_branch
      %33 = sbr.rel (0) target = $region21
    $region20: #{_convscale_forward_impl.1} parent=1 // pred_region
      _
    $region21: #{_convscale_forward_impl.1} parent=1 // pred_fallthru
      _
    // Predicated region
    $region22: #{_convscale_forward_impl.1} parent=1 // pred_check
      _
    $region23: #{_convscale_forward_impl.1} parent=1 // pred_check_branch
      %35 = sbr.rel (0) target = $region25
    $region24: #{_convscale_forward_impl.1} parent=1 // pred_region
      %s37 = ssub.s32 12288, 12288
      %38 = vsyncadd [#allocation7], %s37
      %s39 = sshll.u32 [#allocation6], 4
      %s40 = int_to_ptr.vmem [resolvable:$true] %s39
      %45 = dma.hbm_to_vmem [thread:$0]  %s5, 12288, %s40, [#allocation7], 128, 128, 8
    $region25: #{_convscale_forward_impl.1} parent=1 // pred_fallthru
      _
    // Predicated region
    $region26: #{_convscale_forward_impl.1} parent=1 // pred_check
      _
    $region27: #{_convscale_forward_impl.1} parent=1 // pred_check_branch
      %47 = sbr.rel (0) target = $region29
    $region28: #{_convscale_forward_impl.1} parent=1 // pred_region
      _
    $region29: #{_convscale_forward_impl.1} parent=1 // pred_fallthru
      _
    // Predicated region
    $region30: #{_convscale_forward_impl.1} parent=1 // pred_check
      _
    $region31: #{_convscale_forward_impl.1} parent=1 // pred_check_branch
      %49 = sbr.rel (0) target = $region33
    $region32: #{_convscale_forward_impl.1} parent=1 // pred_region
      %50 = dma.done [#allocation5], 12288
    $region33: #{_convscale_forward_impl.1} parent=1 // pred_fallthru
      _
    // Predicated region
    $region34: #{_convscale_forward_impl.1} parent=1 // pred_check
      _
    $region35: #{_convscale_forward_impl.1} parent=1 // pred_check_branch
      %52 = sbr.rel (0) target = $region37
    $region36: #{_convscale_forward_impl.1} parent=1 // pred_region
      %53 = dma.done [#allocation7], 12288
    $region37: #{_convscale_forward_impl.1} parent=1 // pred_fallthru
      _
    %v54 = vld [vmem:[%s0] sm:$0xff]
    %v55 = vld [vmem:[%s0 + $0x8] sm:$0xff]
    %vm58 = vcmask 1040384
    %v59 = vrot.slane %v54, 7
    %v60 = vrot.slane %v55, 7
    %v61 = vsel %vm58, %v59, %v60
    %vm65 = vcmask 523265
    %66 = vst.msk [vmem:[#allocation2] sm:$0xfe] %vm65, %v59
    %vm67 = vcmask 523264
    %68 = vst.msk [vmem:[#allocation2 + $0x10] sm:$0xff] %vm67, %v61
    %vm69 = vcmask 516096
    %70 = vst.msk [vmem:[#allocation2 + $0x20] sm:$0x1] %vm69, %v60
    %s71 = scalar_lea.vmem %s0, 16
    %v72 = vld [vmem:[%s71] sm:$0xff]
    %v73 = vld [vmem:[%s71 + $0x8] sm:$0xff]
    %vm76 = vcmask 1042432
    %v77 = vrot.slane %v72, 5
    %v78 = vrot.slane %v73, 5
    %v79 = vsel %vm76, %v77, %v78
    %vm83 = vcmask 523267
    %84 = vst.msk [vmem:[#allocation2 + $0x20] sm:$0xf8] %vm83, %v77
    %85 = vst.msk [vmem:[#allocation2 + $0x30] sm:$0xff] %vm67, %v79
    %vm86 = vcmask 518144
    %87 = vst.msk [vmem:[#allocation2 + $0x40] sm:$0x7] %vm86, %v78
    %88 = vst.msk [vmem:[#allocation2] sm:$0x1] %vm69, 0.0
    %vm89 = vcmask 518145
    %90 = vst.msk [vmem:[#allocation2 + $0x20] sm:$0x6] %vm89, 0.0
    %91 = vst.msk [vmem:[#allocation2 + $0x43] sm:$0x1] %vm69, 0.0
    %v92 = vld [vmem:[#allocation2] sm:$0xff]
    %v93 = vld [vmem:[#allocation2 + $0x10] sm:$0xff]
    %v94 = vld [vmem:[#allocation2 + $0x20] sm:$0xff]
    %v95 = vld [vmem:[#allocation2 + $0x30] sm:$0xff]
    %v96 = vld [vmem:[#allocation2 + $0x40] sm:$0x3]
    %v97 = vld [vmem:[%s1] sm:$0xff]
    %v98 = vld [vmem:[%s1 + $0x8] sm:$0xff]
    %v99 = vld [vmem:[%s1 + $0x10] sm:$0xff]
    %v100 = vld [vmem:[%s1 + $0x18] sm:$0xff]
    %v101 = vld [vmem:[%s1 + $0x20] sm:$0xff]
    %v102 = vld [vmem:[%s1 + $0x28] sm:$0xff]
    %v103 = vld [vmem:[%s1 + $0x30] sm:$0xff]
    %v104 = vld [vmem:[%s1 + $0x38] sm:$0xff]
    %v105 = vld [vmem:[#allocation2] sm:$0xfe]
    %v106 = vld [vmem:[#allocation2 + $0x40] sm:$0x7]
    %s107 = scalar_lea.vmem %s1, 64
    %v108 = vld [vmem:[%s107] sm:$0xff]
    %v109 = vld [vmem:[%s107 + $0x8] sm:$0xff]
    %v110 = vld [vmem:[%s107 + $0x10] sm:$0xff]
    %v111 = vld [vmem:[%s107 + $0x18] sm:$0xff]
    %v112 = vld [vmem:[%s107 + $0x20] sm:$0xff]
    %v113 = vld [vmem:[%s107 + $0x28] sm:$0xff]
    %v114 = vld [vmem:[%s107 + $0x30] sm:$0xff]
    %v115 = vld [vmem:[%s107 + $0x38] sm:$0xff]
    %vm121 = vcmask 1046528
    %v122 = vrot.slane %v105, 1
    %v123 = vrot.slane %v93, 1
    %v124 = vsel %vm121, %v122, %v123
    %v125 = vrot.slane %v94, 1
    %v126 = vsel %vm121, %v123, %v125
    %v127 = vrot.slane %v95, 1
    %v128 = vsel %vm121, %v125, %v127
    %v129 = vrot.slane %v106, 1
    %v130 = vsel %vm121, %v127, %v129
    %v131 = vsel %vm67, %v124, 0
    %v133 = vsel %vm67, %v126, 0
    %v135 = vsel %vm67, %v128, 0
    %v137 = vsel %vm67, %v130, 0
    %v139 = vsel %vm67, %v129, 0
    %141 = vmatprep.subr.mxu0 0.0
    %142 = vmatpush1.msra.mxu0 %v108
    %143 = vmatprep.subr.mxu0 0.0
    %144 = vmatpush1.msra.mxu0 %v109
    %145 = vmatprep.subr.mxu0 0.0
    %146 = vmatpush1.msra.mxu0 %v110
    %147 = vmatprep.subr.mxu0 0.0
    %148 = vmatpush1.msra.mxu0 %v111
    %149 = vmatprep.subr.mxu0 0.0
    %150 = vmatpush1.msra.mxu0 %v112
    %151 = vmatprep.subr.mxu0 0.0
    %152 = vmatpush1.msra.mxu0 %v113
    %153 = vmatprep.subr.mxu0 0.0
    %154 = vmatpush1.msra.mxu0 %v114
    %155 = vmatprep.subr.mxu0 0.0
    %156 = vmatpush1.msra.mxu0 %v115
    %157 = vmatprep.subr.mxu0 0.0
    %158 = vmatpush1.msra.mxu0 0.0
    %159 = vmatprep.subr.mxu0 0.0
    %160 = vmatpush1.msra.mxu0 0.0
    %161 = vmatprep.subr.mxu0 0.0
    %162 = vmatpush1.msra.mxu0 0.0
    %163 = vmatprep.subr.mxu0 0.0
    %164 = vmatpush1.msra.mxu0 0.0
    %165 = vmatprep.subr.mxu0 0.0
    %166 = vmatpush1.msra.mxu0 0.0
    %167 = vmatprep.subr.mxu0 0.0
    %168 = vmatpush1.msra.mxu0 0.0
    %169 = vmatprep.subr.mxu0 0.0
    %170 = vmatpush1.msra.mxu0 0.0
    %171 = vmatprep.subr.mxu0 0.0
    %172 = vmatpush1.msra.mxu0 0.0
    %173 = vmatprep.subr.mxu0 0.0
    %174 = vmatpush1.msra.mxu0 0.0
    %175 = vmatprep.subr.mxu0 0.0
    %176 = vmatpush1.msra.mxu0 0.0
    %177 = vmatprep.subr.mxu0 0.0
    %178 = vmatpush1.msra.mxu0 0.0
    %179 = vmatprep.subr.mxu0 0.0
    %180 = vmatpush1.msra.mxu0 0.0
    %181 = vmatprep.subr.mxu0 0.0
    %182 = vmatpush1.msra.mxu0 0.0
    %183 = vmatprep.subr.mxu0 0.0
    %184 = vmatpush1.msra.mxu0 0.0
    %185 = vmatprep.subr.mxu0 0.0
    %186 = vmatpush1.msra.mxu0 0.0
    %187 = vmatprep.subr.mxu0 0.0
    %188 = vmatpush1.msra.mxu0 0.0
    %189 = vmatprep.subr.mxu0 0.0
    %190 = vmatpush1.msra.mxu0 0.0
    %191 = vmatprep.subr.mxu0 0.0
    %192 = vmatpush1.msra.mxu0 0.0
    %193 = vmatprep.subr.mxu0 0.0
    %194 = vmatpush1.msra.mxu0 0.0
    %195 = vmatprep.subr.mxu0 0.0
    %196 = vmatpush1.msra.mxu0 0.0
    %197 = vmatprep.subr.mxu0 0.0
    %198 = vmatpush1.msra.mxu0 0.0
    %199 = vmatprep.subr.mxu0 0.0
    %200 = vmatpush1.msra.mxu0 0.0
    %201 = vmatprep.subr.mxu0 0.0
    %202 = vmatpush1.msra.mxu0 0.0
    %203 = vmatprep.subr.mxu0 0.0
    %204 = vmatpush1.msra.mxu0 0.0
    %205 = vmatprep.mubr.f32.mxu0 0.0
    %206 = vmatmul.mubr.f32.gmra.mrb[0].mxu0 %v131
    %v207 = vpop.f32.mrb[0].mxu0
    %v208 = vadd.f32 0.0, %v207
    %v209 = vpop.f32.mrb[0].mxu0
    %210 = vmatprep.mubr.f32.mxu0 0.0
    %211 = vmatmul.mubr.f32.gmra.mrb[0].mxu0 %v133
    %v212 = vpop.f32.mrb[0].mxu0
    %v213 = vadd.f32 0.0, %v212
    %v214 = vpop.f32.mrb[0].mxu0
    %215 = vmatprep.mubr.f32.mxu0 0.0
    %216 = vmatmul.mubr.f32.gmra.mrb[0].mxu0 %v135
    %v217 = vpop.f32.mrb[0].mxu0
    %v218 = vadd.f32 0.0, %v217
    %v219 = vpop.f32.mrb[0].mxu0
    %220 = vmatprep.mubr.f32.mxu0 0.0
    %221 = vmatmul.mubr.f32.gmra.mrb[0].mxu0 %v137
    %v222 = vpop.f32.mrb[0].mxu0
    %v223 = vadd.f32 0.0, %v222
    %v224 = vpop.f32.mrb[0].mxu0
    %225 = vmatprep.mubr.f32.mxu0 0.0
    %226 = vmatmul.mubr.f32.gmra.mrb[0].mxu0 %v139
    %v227 = vpop.f32.mrb[0].mxu0
    %v228 = vadd.f32 0.0, %v227
    %v229 = vpop.f32.mrb[0].mxu0
    %230 = vdwg.mxu0
    %v232 = vsel %vm67, %v92, 0
    %v234 = vsel %vm67, %v93, 0
    %v236 = vsel %vm67, %v94, 0
    %v238 = vsel %vm67, %v95, 0
    %v241 = vsel %vm67, %v96, 0
    %243 = vmatprep.subr.mxu0 0.0
    %244 = vmatpush1.msra.mxu0 %v97
    %245 = vmatprep.subr.mxu0 0.0
    %246 = vmatpush1.msra.mxu0 %v98
    %247 = vmatprep.subr.mxu0 0.0
    %248 = vmatpush1.msra.mxu0 %v99
    %249 = vmatprep.subr.mxu0 0.0
    %250 = vmatpush1.msra.mxu0 %v100
    %251 = vmatprep.subr.mxu0 0.0
    %252 = vmatpush1.msra.mxu0 %v101
    %253 = vmatprep.subr.mxu0 0.0
    %254 = vmatpush1.msra.mxu0 %v102
    %255 = vmatprep.subr.mxu0 0.0
    %256 = vmatpush1.msra.mxu0 %v103
    %257 = vmatprep.subr.mxu0 0.0
    %258 = vmatpush1.msra.mxu0 %v104
    %259 = vmatprep.subr.mxu0 0.0
    %260 = vmatpush1.msra.mxu0 0.0
    %261 = vmatprep.subr.mxu0 0.0
    %262 = vmatpush1.msra.mxu0 0.0
    %263 = vmatprep.subr.mxu0 0.0
    %264 = vmatpush1.msra.mxu0 0.0
    %265 = vmatprep.subr.mxu0 0.0
    %266 = vmatpush1.msra.mxu0 0.0
    %267 = vmatprep.subr.mxu0 0.0
    %268 = vmatpush1.msra.mxu0 0.0
    %269 = vmatprep.subr.mxu0 0.0
    %270 = vmatpush1.msra.mxu0 0.0
    %271 = vmatprep.subr.mxu0 0.0
    %272 = vmatpush1.msra.mxu0 0.0
    %273 = vmatprep.subr.mxu0 0.0
    %274 = vmatpush1.msra.mxu0 0.0
    %275 = vmatprep.subr.mxu0 0.0
    %276 = vmatpush1.msra.mxu0 0.0
    %277 = vmatprep.subr.mxu0 0.0
    %278 = vmatpush1.msra.mxu0 0.0
    %279 = vmatprep.subr.mxu0 0.0
    %280 = vmatpush1.msra.mxu0 0.0
    %281 = vmatprep.subr.mxu0 0.0
    %282 = vmatpush1.msra.mxu0 0.0
    %283 = vmatprep.subr.mxu0 0.0
    %284 = vmatpush1.msra.mxu0 0.0
    %285 = vmatprep.subr.mxu0 0.0
    %286 = vmatpush1.msra.mxu0 0.0
    %287 = vmatprep.subr.mxu0 0.0
    %288 = vmatpush1.msra.mxu0 0.0
    %289 = vmatprep.subr.mxu0 0.0
    %290 = vmatpush1.msra.mxu0 0.0
    %291 = vmatprep.subr.mxu0 0.0
    %292 = vmatpush1.msra.mxu0 0.0
    %293 = vmatprep.subr.mxu0 0.0
    %294 = vmatpush1.msra.mxu0 0.0
    %295 = vmatprep.subr.mxu0 0.0
    %296 = vmatpush1.msra.mxu0 0.0
    %297 = vmatprep.subr.mxu0 0.0
    %298 = vmatpush1.msra.mxu0 0.0
    %299 = vmatprep.subr.mxu0 0.0
    %300 = vmatpush1.msra.mxu0 0.0
    %301 = vmatprep.subr.mxu0 0.0
    %302 = vmatpush1.msra.mxu0 0.0
    %303 = vmatprep.subr.mxu0 0.0
    %304 = vmatpush1.msra.mxu0 0.0
    %305 = vmatprep.subr.mxu0 0.0
    %306 = vmatpush1.msra.mxu0 0.0
    %307 = vmatprep.mubr.f32.mxu0 0.0
    %308 = vmatmul.mubr.f32.gmra.mrb[0].mxu0 %v232
    %v309 = vpop.f32.mrb[0].mxu0
    %v310 = vadd.f32 %v208, %v309
    %v311 = vpop.f32.mrb[0].mxu0
    %312 = vmatprep.mubr.f32.mxu0 0.0
    %313 = vmatmul.mubr.f32.gmra.mrb[0].mxu0 %v234
    %v314 = vpop.f32.mrb[0].mxu0
    %v315 = vadd.f32 %v213, %v314
    %v316 = vpop.f32.mrb[0].mxu0
    %317 = vmatprep.mubr.f32.mxu0 0.0
    %318 = vmatmul.mubr.f32.gmra.mrb[0].mxu0 %v236
    %v319 = vpop.f32.mrb[0].mxu0
    %v320 = vadd.f32 %v218, %v319
    %v321 = vpop.f32.mrb[0].mxu0
    %322 = vmatprep.mubr.f32.mxu0 0.0
    %323 = vmatmul.mubr.f32.gmra.mrb[0].mxu0 %v238
    %v324 = vpop.f32.mrb[0].mxu0
    %v325 = vadd.f32 %v223, %v324
    %v326 = vpop.f32.mrb[0].mxu0
    %327 = vmatprep.mubr.f32.mxu0 0.0
    %328 = vmatmul.mubr.f32.gmra.mrb[0].mxu0 %v241
    %v329 = vpop.f32.mrb[0].mxu0
    %v330 = vadd.f32 %v228, %v329
    %v331 = vpop.f32.mrb[0].mxu0
    %332 = vdwg.mxu0
    %v333 = vld [vmem:[#allocation2] sm:$0xfc]
    %v334 = vld [vmem:[#allocation2 + $0x40] sm:$0xf]
    %s335 = scalar_lea.vmem %s1, 128
    %v336 = vld [vmem:[%s335] sm:$0xff]
    %v337 = vld [vmem:[%s335 + $0x8] sm:$0xff]
    %v338 = vld [vmem:[%s335 + $0x10] sm:$0xff]
    %v339 = vld [vmem:[%s335 + $0x18] sm:$0xff]
    %v340 = vld [vmem:[%s335 + $0x20] sm:$0xff]
    %v341 = vld [vmem:[%s335 + $0x28] sm:$0xff]
    %v342 = vld [vmem:[%s335 + $0x30] sm:$0xff]
    %v343 = vld [vmem:[%s335 + $0x38] sm:$0xff]
    %vm346 = vcmask 1045504
    %v347 = vrot.slane %v333, 2
    %v348 = vrot.slane %v93, 2
    %v349 = vsel %vm346, %v347, %v348
    %v350 = vrot.slane %v94, 2
    %v351 = vsel %vm346, %v348, %v350
    %v352 = vrot.slane %v95, 2
    %v353 = vsel %vm346, %v350, %v352
    %v354 = vrot.slane %v334, 2
    %v355 = vsel %vm346, %v352, %v354
    %v356 = vsel %vm67, %v349, 0
    %v358 = vsel %vm67, %v351, 0
    %v360 = vsel %vm67, %v353, 0
    %v362 = vsel %vm67, %v355, 0
    %v364 = vsel %vm67, %v354, 0
    %366 = vmatprep.subr.mxu0 0.0
    %367 = vmatpush1.msra.mxu0 %v336
    %368 = vmatprep.subr.mxu0 0.0
    %369 = vmatpush1.msra.mxu0 %v337
    %370 = vmatprep.subr.mxu0 0.0
    %371 = vmatpush1.msra.mxu0 %v338
    %372 = vmatprep.subr.mxu0 0.0
    %373 = vmatpush1.msra.mxu0 %v339
    %374 = vmatprep.subr.mxu0 0.0
    %375 = vmatpush1.msra.mxu0 %v340
    %376 = vmatprep.subr.mxu0 0.0
    %377 = vmatpush1.msra.mxu0 %v341
    %378 = vmatprep.subr.mxu0 0.0
    %379 = vmatpush1.msra.mxu0 %v342
    %380 = vmatprep.subr.mxu0 0.0
    %381 = vmatpush1.msra.mxu0 %v343
    %382 = vmatprep.subr.mxu0 0.0
    %383 = vmatpush1.msra.mxu0 0.0
    %384 = vmatprep.subr.mxu0 0.0
    %385 = vmatpush1.msra.mxu0 0.0
    %386 = vmatprep.subr.mxu0 0.0
    %387 = vmatpush1.msra.mxu0 0.0
    %388 = vmatprep.subr.mxu0 0.0
    %389 = vmatpush1.msra.mxu0 0.0
    %390 = vmatprep.subr.mxu0 0.0
    %391 = vmatpush1.msra.mxu0 0.0
    %392 = vmatprep.subr.mxu0 0.0
    %393 = vmatpush1.msra.mxu0 0.0
    %394 = vmatprep.subr.mxu0 0.0
    %395 = vmatpush1.msra.mxu0 0.0
    %396 = vmatprep.subr.mxu0 0.0
    %397 = vmatpush1.msra.mxu0 0.0
    %398 = vmatprep.subr.mxu0 0.0
    %399 = vmatpush1.msra.mxu0 0.0
    %400 = vmatprep.subr.mxu0 0.0
    %401 = vmatpush1.msra.mxu0 0.0
    %402 = vmatprep.subr.mxu0 0.0
    %403 = vmatpush1.msra.mxu0 0.0
    %404 = vmatprep.subr.mxu0 0.0
    %405 = vmatpush1.msra.mxu0 0.0
    %406 = vmatprep.subr.mxu0 0.0
    %407 = vmatpush1.msra.mxu0 0.0
    %408 = vmatprep.subr.mxu0 0.0
    %409 = vmatpush1.msra.mxu0 0.0
    %410 = vmatprep.subr.mxu0 0.0
    %411 = vmatpush1.msra.mxu0 0.0
    %412 = vmatprep.subr.mxu0 0.0
    %413 = vmatpush1.msra.mxu0 0.0
    %414 = vmatprep.subr.mxu0 0.0
    %415 = vmatpush1.msra.mxu0 0.0
    %416 = vmatprep.subr.mxu0 0.0
    %417 = vmatpush1.msra.mxu0 0.0
    %418 = vmatprep.subr.mxu0 0.0
    %419 = vmatpush1.msra.mxu0 0.0
    %420 = vmatprep.subr.mxu0 0.0
    %421 = vmatpush1.msra.mxu0 0.0
    %422 = vmatprep.subr.mxu0 0.0
    %423 = vmatpush1.msra.mxu0 0.0
    %424 = vmatprep.subr.mxu0 0.0
    %425 = vmatpush1.msra.mxu0 0.0
    %426 = vmatprep.subr.mxu0 0.0
    %427 = vmatpush1.msra.mxu0 0.0
    %428 = vmatprep.subr.mxu0 0.0
    %429 = vmatpush1.msra.mxu0 0.0
    %430 = vmatprep.mubr.f32.mxu0 0.0
    %431 = vmatmul.mubr.f32.gmra.mrb[0].mxu0 %v356
    %v432 = vpop.f32.mrb[0].mxu0
    %v433 = vadd.f32 0.0, %v432
    %v434 = vpop.f32.mrb[0].mxu0
    %435 = vmatprep.mubr.f32.mxu0 0.0
    %436 = vmatmul.mubr.f32.gmra.mrb[0].mxu0 %v358
    %v437 = vpop.f32.mrb[0].mxu0
    %v438 = vadd.f32 0.0, %v437
    %v439 = vpop.f32.mrb[0].mxu0
    %440 = vmatprep.mubr.f32.mxu0 0.0
    %441 = vmatmul.mubr.f32.gmra.mrb[0].mxu0 %v360
    %v442 = vpop.f32.mrb[0].mxu0
    %v443 = vadd.f32 0.0, %v442
    %v444 = vpop.f32.mrb[0].mxu0
    %445 = vmatprep.mubr.f32.mxu0 0.0
    %446 = vmatmul.mubr.f32.gmra.mrb[0].mxu0 %v362
    %v447 = vpop.f32.mrb[0].mxu0
    %v448 = vadd.f32 0.0, %v447
    %v449 = vpop.f32.mrb[0].mxu0
    %450 = vmatprep.mubr.f32.mxu0 0.0
    %451 = vmatmul.mubr.f32.gmra.mrb[0].mxu0 %v364
    %v452 = vpop.f32.mrb[0].mxu0
    %v453 = vadd.f32 0.0, %v452
    %v454 = vpop.f32.mrb[0].mxu0
    %455 = vdwg.mxu0
    %v456 = vadd.f32 %v310, %v433
    %v457 = vadd.f32 %v315, %v438
    %v458 = vadd.f32 %v320, %v443
    %v459 = vadd.f32 %v325, %v448
    %v460 = vadd.f32 %v330, %v453
    %v461 = vld [vmem:[%s2] sm:$0x1]
    %v463 = vlaneseq
    %v464 = vshrl.u32 %v463, 7
    %v465 = vsub.s32 0, %v464
    %v466 = vrot.slane %v461, %v465
    %v468 = vadd.f32 %v456, %v466
    %v469 = vadd.f32 %v457, %v466
    %v470 = vadd.f32 %v458, %v466
    %v471 = vadd.f32 %v459, %v466
    %v472 = vadd.f32 %v460, %v466
    %v473 = vmax.f32 %v468, 0.0
    %v474 = vmax.f32 %v469, 0.0
    %v475 = vmax.f32 %v470, 0.0
    %v476 = vmax.f32 %v471, 0.0
    %v477 = vmax.f32 %v472, 0.0
    %478 = vst [vmem:[#allocation3 + $0x1] sm:$0xff] %v473
    %479 = vst [vmem:[#allocation3 + $0x9] sm:$0xff] %v474
    %480 = vst [vmem:[#allocation3 + $0x11] sm:$0xff] %v475
    %481 = vst [vmem:[#allocation3 + $0x19] sm:$0xff] %v476
    %482 = vst [vmem:[#allocation3 + $0x21] sm:$0x3] %v477
    %483 = vst [vmem:[#allocation3] sm:$0x1] 0.0
    %484 = vst [vmem:[#allocation3 + $0x11] sm:$0x3] 0.0
    %485 = vst [vmem:[#allocation3 + $0x23] sm:$0x1] 0.0
    %v486 = vld [vmem:[#allocation3] sm:$0xff]
    %v487 = vld [vmem:[#allocation3 + $0x8] sm:$0xff]
    %v488 = vld [vmem:[#allocation3 + $0x10] sm:$0xff]
    %v489 = vld [vmem:[#allocation3 + $0x18] sm:$0xff]
    %v490 = vld [vmem:[#allocation3 + $0x20] sm:$0x3]
    %v491 = vld [vmem:[#allocation4] sm:$0xff]
    %v492 = vld [vmem:[#allocation4 + $0x8] sm:$0xff]
    %v493 = vld [vmem:[#allocation4 + $0x10] sm:$0xff]
    %v494 = vld [vmem:[#allocation4 + $0x18] sm:$0xff]
    %v495 = vld [vmem:[#allocation4 + $0x20] sm:$0xff]
    %v496 = vld [vmem:[#allocation4 + $0x28] sm:$0xff]
    %v497 = vld [vmem:[#allocation4 + $0x30] sm:$0xff]
    %v498 = vld [vmem:[#allocation4 + $0x38] sm:$0xff]
    %v499 = vld [vmem:[#allocation4 + $0x40] sm:$0xff]
    %v500 = vld [vmem:[#allocation4 + $0x48] sm:$0xff]
    %v501 = vld [vmem:[#allocation4 + $0x50] sm:$0xff]
    %v502 = vld [vmem:[#allocation4 + $0x58] sm:$0xff]
    %v503 = vld [vmem:[#allocation4 + $0x60] sm:$0xff]
    %v504 = vld [vmem:[#allocation4 + $0x68] sm:$0xff]
    %v505 = vld [vmem:[#allocation4 + $0x70] sm:$0xff]
    %v506 = vld [vmem:[#allocation4 + $0x78] sm:$0xff]
    %v507 = vld [vmem:[#allocation4 + $0x80] sm:$0xff]
    %v508 = vld [vmem:[#allocation4 + $0x88] sm:$0xff]
    %v509 = vld [vmem:[#allocation4 + $0x90] sm:$0xff]
    %v510 = vld [vmem:[#allocation4 + $0x98] sm:$0xff]
    %v511 = vld [vmem:[#allocation4 + $0xa0] sm:$0xff]
    %v512 = vld [vmem:[#allocation4 + $0xa8] sm:$0xff]
    %v513 = vld [vmem:[#allocation4 + $0xb0] sm:$0xff]
    %v514 = vld [vmem:[#allocation4 + $0xb8] sm:$0xff]
    %v515 = vld [vmem:[#allocation4 + $0xc0] sm:$0xff]
    %v516 = vld [vmem:[#allocation4 + $0xc8] sm:$0xff]
    %v517 = vld [vmem:[#allocation4 + $0xd0] sm:$0xff]
    %v518 = vld [vmem:[#allocation4 + $0xd8] sm:$0xff]
    %v519 = vld [vmem:[#allocation4 + $0xe0] sm:$0xff]
    %v520 = vld [vmem:[#allocation4 + $0xe8] sm:$0xff]
    %v521 = vld [vmem:[#allocation4 + $0xf0] sm:$0xff]
    %v522 = vld [vmem:[#allocation4 + $0xf8] sm:$0xff]
    %v523 = vld [vmem:[#allocation3 + $0x1] sm:$0xff]
    %v524 = vld [vmem:[#allocation3 + $0x9] sm:$0xff]
    %v525 = vld [vmem:[#allocation3 + $0x11] sm:$0xff]
    %v526 = vld [vmem:[#allocation3 + $0x19] sm:$0xff]
    %v527 = vld [vmem:[#allocation3 + $0x21] sm:$0x3]
    %s528 = scalar_lea.vmem [#allocation4], 256
    %v529 = vld [vmem:[%s528] sm:$0xff]
    %v530 = vld [vmem:[%s528 + $0x8] sm:$0xff]
    %v531 = vld [vmem:[%s528 + $0x10] sm:$0xff]
    %v532 = vld [vmem:[%s528 + $0x18] sm:$0xff]
    %v533 = vld [vmem:[%s528 + $0x20] sm:$0xff]
    %v534 = vld [vmem:[%s528 + $0x28] sm:$0xff]
    %v535 = vld [vmem:[%s528 + $0x30] sm:$0xff]
    %v536 = vld [vmem:[%s528 + $0x38] sm:$0xff]
    %v537 = vld [vmem:[%s528 + $0x40] sm:$0xff]
    %v538 = vld [vmem:[%s528 + $0x48] sm:$0xff]
    %v539 = vld [vmem:[%s528 + $0x50] sm:$0xff]
    %v540 = vld [vmem:[%s528 + $0x58] sm:$0xff]
    %v541 = vld [vmem:[%s528 + $0x60] sm:$0xff]
    %v542 = vld [vmem:[%s528 + $0x68] sm:$0xff]
    %v543 = vld [vmem:[%s528 + $0x70] sm:$0xff]
    %v544 = vld [vmem:[%s528 + $0x78] sm:$0xff]
    %v545 = vld [vmem:[%s528 + $0x80] sm:$0xff]
    %v546 = vld [vmem:[%s528 + $0x88] sm:$0xff]
    %v547 = vld [vmem:[%s528 + $0x90] sm:$0xff]
    %v548 = vld [vmem:[%s528 + $0x98] sm:$0xff]
    %v549 = vld [vmem:[%s528 + $0xa0] sm:$0xff]
    %v550 = vld [vmem:[%s528 + $0xa8] sm:$0xff]
    %v551 = vld [vmem:[%s528 + $0xb0] sm:$0xff]
    %v552 = vld [vmem:[%s528 + $0xb8] sm:$0xff]
    %v553 = vld [vmem:[%s528 + $0xc0] sm:$0xff]
    %v554 = vld [vmem:[%s528 + $0xc8] sm:$0xff]
    %v555 = vld [vmem:[%s528 + $0xd0] sm:$0xff]
    %v556 = vld [vmem:[%s528 + $0xd8] sm:$0xff]
    %v557 = vld [vmem:[%s528 + $0xe0] sm:$0xff]
    %v558 = vld [vmem:[%s528 + $0xe8] sm:$0xff]
    %v559 = vld [vmem:[%s528 + $0xf0] sm:$0xff]
    %v560 = vld [vmem:[%s528 + $0xf8] sm:$0xff]
    %561 = vmatprep.subr.mxu0 %v530
    %562 = vmatpush1.msra.mxu0 %v529
    %563 = vmatprep.subr.mxu0 %v532
    %564 = vmatpush1.msra.mxu0 %v531
    %565 = vmatprep.subr.mxu0 %v534
    %566 = vmatpush1.msra.mxu0 %v533
    %567 = vmatprep.subr.mxu0 %v536
    %568 = vmatpush1.msra.mxu0 %v535
    %569 = vmatprep.subr.mxu0 %v538
    %570 = vmatpush1.msra.mxu0 %v537
    %571 = vmatprep.subr.mxu0 %v540
    %572 = vmatpush1.msra.mxu0 %v539
    %573 = vmatprep.subr.mxu0 %v542
    %574 = vmatpush1.msra.mxu0 %v541
    %575 = vmatprep.subr.mxu0 %v544
    %576 = vmatpush1.msra.mxu0 %v543
    %577 = vmatprep.subr.mxu0 %v546
    %578 = vmatpush1.msra.mxu0 %v545
    %579 = vmatprep.subr.mxu0 %v548
    %580 = vmatpush1.msra.mxu0 %v547
    %581 = vmatprep.subr.mxu0 %v550
    %582 = vmatpush1.msra.mxu0 %v549
    %583 = vmatprep.subr.mxu0 %v552
    %584 = vmatpush1.msra.mxu0 %v551
    %585 = vmatprep.subr.mxu0 %v554
    %586 = vmatpush1.msra.mxu0 %v553
    %587 = vmatprep.subr.mxu0 %v556
    %588 = vmatpush1.msra.mxu0 %v555
    %589 = vmatprep.subr.mxu0 %v558
    %590 = vmatpush1.msra.mxu0 %v557
    %591 = vmatprep.subr.mxu0 %v560
    %592 = vmatpush1.msra.mxu0 %v559
    %593 = vmatprep.subr.mxu0 0.0
    %594 = vmatpush1.msra.mxu0 0.0
    %595 = vmatprep.subr.mxu0 0.0
    %596 = vmatpush1.msra.mxu0 0.0
    %597 = vmatprep.subr.mxu0 0.0
    %598 = vmatpush1.msra.mxu0 0.0
    %599 = vmatprep.subr.mxu0 0.0
    %600 = vmatpush1.msra.mxu0 0.0
    %601 = vmatprep.subr.mxu0 0.0
    %602 = vmatpush1.msra.mxu0 0.0
    %603 = vmatprep.subr.mxu0 0.0
    %604 = vmatpush1.msra.mxu0 0.0
    %605 = vmatprep.subr.mxu0 0.0
    %606 = vmatpush1.msra.mxu0 0.0
    %607 = vmatprep.subr.mxu0 0.0
    %608 = vmatpush1.msra.mxu0 0.0
    %609 = vmatprep.subr.mxu0 0.0
    %610 = vmatpush1.msra.mxu0 0.0
    %611 = vmatprep.subr.mxu0 0.0
    %612 = vmatpush1.msra.mxu0 0.0
    %613 = vmatprep.subr.mxu0 0.0
    %614 = vmatpush1.msra.mxu0 0.0
    %615 = vmatprep.subr.mxu0 0.0
    %616 = vmatpush1.msra.mxu0 0.0
    %617 = vmatprep.subr.mxu0 0.0
    %618 = vmatpush1.msra.mxu0 0.0
    %619 = vmatprep.subr.mxu0 0.0
    %620 = vmatpush1.msra.mxu0 0.0
    %621 = vmatprep.subr.mxu0 0.0
    %622 = vmatpush1.msra.mxu0 0.0
    %623 = vmatprep.subr.mxu0 0.0
    %624 = vmatpush1.msra.mxu0 0.0
    %625 = vmatprep.mubr.f32.mxu0 0.0
    %626 = vmatmul.mubr.f32.gmra.mrb[0].mxu0 %v523
    %v627 = vpop.f32.mrb[0].mxu0
    %v628 = vadd.f32 0.0, %v627
    %v629 = vpop.f32.mrb[0].mxu0
    %v630 = vadd.f32 0.0, %v629
    %631 = vmatprep.mubr.f32.mxu0 0.0
    %632 = vmatmul.mubr.f32.gmra.mrb[0].mxu0 %v524
    %v633 = vpop.f32.mrb[0].mxu0
    %v634 = vadd.f32 0.0, %v633
    %v635 = vpop.f32.mrb[0].mxu0
    %v636 = vadd.f32 0.0, %v635
    %637 = vmatprep.mubr.f32.mxu0 0.0
    %638 = vmatmul.mubr.f32.gmra.mrb[0].mxu0 %v525
    %v639 = vpop.f32.mrb[0].mxu0
    %v640 = vadd.f32 0.0, %v639
    %v641 = vpop.f32.mrb[0].mxu0
    %v642 = vadd.f32 0.0, %v641
    %643 = vmatprep.mubr.f32.mxu0 0.0
    %644 = vmatmul.mubr.f32.gmra.mrb[0].mxu0 %v526
    %v645 = vpop.f32.mrb[0].mxu0
    %v646 = vadd.f32 0.0, %v645
    %v647 = vpop.f32.mrb[0].mxu0
    %v648 = vadd.f32 0.0, %v647
    %649 = vmatprep.mubr.f32.mxu0 0.0
    %650 = vmatmul.mubr.f32.gmra.mrb[0].mxu0 %v527
    %v651 = vpop.f32.mrb[0].mxu0
    %v652 = vadd.f32 0.0, %v651
    %v653 = vpop.f32.mrb[0].mxu0
    %v654 = vadd.f32 0.0, %v653
    %655 = vdwg.mxu0
    %656 = vmatprep.subr.mxu0 %v492
    %657 = vmatpush1.msra.mxu0 %v491
    %658 = vmatprep.subr.mxu0 %v494
    %659 = vmatpush1.msra.mxu0 %v493
    %660 = vmatprep.subr.mxu0 %v496
    %661 = vmatpush1.msra.mxu0 %v495
    %662 = vmatprep.subr.mxu0 %v498
    %663 = vmatpush1.msra.mxu0 %v497
    %664 = vmatprep.subr.mxu0 %v500
    %665 = vmatpush1.msra.mxu0 %v499
    %666 = vmatprep.subr.mxu0 %v502
    %667 = vmatpush1.msra.mxu0 %v501
    %668 = vmatprep.subr.mxu0 %v504
    %669 = vmatpush1.msra.mxu0 %v503
    %670 = vmatprep.subr.mxu0 %v506
    %671 = vmatpush1.msra.mxu0 %v505
    %672 = vmatprep.subr.mxu0 %v508
    %673 = vmatpush1.msra.mxu0 %v507
    %674 = vmatprep.subr.mxu0 %v510
    %675 = vmatpush1.msra.mxu0 %v509
    %676 = vmatprep.subr.mxu0 %v512
    %677 = vmatpush1.msra.mxu0 %v511
    %678 = vmatprep.subr.mxu0 %v514
    %679 = vmatpush1.msra.mxu0 %v513
    %680 = vmatprep.subr.mxu0 %v516
    %681 = vmatpush1.msra.mxu0 %v515
    %682 = vmatprep.subr.mxu0 %v518
    %683 = vmatpush1.msra.mxu0 %v517
    %684 = vmatprep.subr.mxu0 %v520
    %685 = vmatpush1.msra.mxu0 %v519
    %686 = vmatprep.subr.mxu0 %v522
    %687 = vmatpush1.msra.mxu0 %v521
    %688 = vmatprep.subr.mxu0 0.0
    %689 = vmatpush1.msra.mxu0 0.0
    %690 = vmatprep.subr.mxu0 0.0
    %691 = vmatpush1.msra.mxu0 0.0
    %692 = vmatprep.subr.mxu0 0.0
    %693 = vmatpush1.msra.mxu0 0.0
    %694 = vmatprep.subr.mxu0 0.0
    %695 = vmatpush1.msra.mxu0 0.0
    %696 = vmatprep.subr.mxu0 0.0
    %697 = vmatpush1.msra.mxu0 0.0
    %698 = vmatprep.subr.mxu0 0.0
    %699 = vmatpush1.msra.mxu0 0.0
    %700 = vmatprep.subr.mxu0 0.0
    %701 = vmatpush1.msra.mxu0 0.0
    %702 = vmatprep.subr.mxu0 0.0
    %703 = vmatpush1.msra.mxu0 0.0
    %704 = vmatprep.subr.mxu0 0.0
    %705 = vmatpush1.msra.mxu0 0.0
    %706 = vmatprep.subr.mxu0 0.0
    %707 = vmatpush1.msra.mxu0 0.0
    %708 = vmatprep.subr.mxu0 0.0
    %709 = vmatpush1.msra.mxu0 0.0
    %710 = vmatprep.subr.mxu0 0.0
    %711 = vmatpush1.msra.mxu0 0.0
    %712 = vmatprep.subr.mxu0 0.0
    %713 = vmatpush1.msra.mxu0 0.0
    %714 = vmatprep.subr.mxu0 0.0
    %715 = vmatpush1.msra.mxu0 0.0
    %716 = vmatprep.subr.mxu0 0.0
    %717 = vmatpush1.msra.mxu0 0.0
    %718 = vmatprep.subr.mxu0 0.0
    %719 = vmatpush1.msra.mxu0 0.0
    %720 = vmatprep.mubr.f32.mxu0 0.0
    %721 = vmatmul.mubr.f32.gmra.mrb[0].mxu0 %v486
    %v722 = vpop.f32.mrb[0].mxu0
    %v723 = vadd.f32 %v628, %v722
    %v724 = vpop.f32.mrb[0].mxu0
    %v725 = vadd.f32 %v630, %v724
    %726 = vmatprep.mubr.f32.mxu0 0.0
    %727 = vmatmul.mubr.f32.gmra.mrb[0].mxu0 %v487
    %v728 = vpop.f32.mrb[0].mxu0
    %v729 = vadd.f32 %v634, %v728
    %v730 = vpop.f32.mrb[0].mxu0
    %v731 = vadd.f32 %v636, %v730
    %732 = vmatprep.mubr.f32.mxu0 0.0
    %733 = vmatmul.mubr.f32.gmra.mrb[0].mxu0 %v488
    %v734 = vpop.f32.mrb[0].mxu0
    %v735 = vadd.f32 %v640, %v734
    %v736 = vpop.f32.mrb[0].mxu0
    %v737 = vadd.f32 %v642, %v736
    %738 = vmatprep.mubr.f32.mxu0 0.0
    %739 = vmatmul.mubr.f32.gmra.mrb[0].mxu0 %v489
    %v740 = vpop.f32.mrb[0].mxu0
    %v741 = vadd.f32 %v646, %v740
    %v742 = vpop.f32.mrb[0].mxu0
    %v743 = vadd.f32 %v648, %v742
    %744 = vmatprep.mubr.f32.mxu0 0.0
    %745 = vmatmul.mubr.f32.gmra.mrb[0].mxu0 %v490
    %v746 = vpop.f32.mrb[0].mxu0
    %v747 = vadd.f32 %v652, %v746
    %v748 = vpop.f32.mrb[0].mxu0
    %v749 = vadd.f32 %v654, %v748
    %750 = vdwg.mxu0
    %v751 = vld [vmem:[#allocation3 + $0x2] sm:$0xff]
    %v752 = vld [vmem:[#allocation3 + $0xa] sm:$0xff]
    %v753 = vld [vmem:[#allocation3 + $0x12] sm:$0xff]
    %v754 = vld [vmem:[#allocation3 + $0x1a] sm:$0xff]
    %v755 = vld [vmem:[#allocation3 + $0x22] sm:$0x3]
    %s756 = scalar_lea.vmem [#allocation4], 512
    %v757 = vld [vmem:[%s756] sm:$0xff]
    %v758 = vld [vmem:[%s756 + $0x8] sm:$0xff]
    %v759 = vld [vmem:[%s756 + $0x10] sm:$0xff]
    %v760 = vld [vmem:[%s756 + $0x18] sm:$0xff]
    %v761 = vld [vmem:[%s756 + $0x20] sm:$0xff]
    %v762 = vld [vmem:[%s756 + $0x28] sm:$0xff]
    %v763 = vld [vmem:[%s756 + $0x30] sm:$0xff]
    %v764 = vld [vmem:[%s756 + $0x38] sm:$0xff]
    %v765 = vld [vmem:[%s756 + $0x40] sm:$0xff]
    %v766 = vld [vmem:[%s756 + $0x48] sm:$0xff]
    %v767 = vld [vmem:[%s756 + $0x50] sm:$0xff]
    %v768 = vld [vmem:[%s756 + $0x58] sm:$0xff]
    %v769 = vld [vmem:[%s756 + $0x60] sm:$0xff]
    %v770 = vld [vmem:[%s756 + $0x68] sm:$0xff]
    %v771 = vld [vmem:[%s756 + $0x70] sm:$0xff]
    %v772 = vld [vmem:[%s756 + $0x78] sm:$0xff]
    %v773 = vld [vmem:[%s756 + $0x80] sm:$0xff]
    %v774 = vld [vmem:[%s756 + $0x88] sm:$0xff]
    %v775 = vld [vmem:[%s756 + $0x90] sm:$0xff]
    %v776 = vld [vmem:[%s756 + $0x98] sm:$0xff]
    %v777 = vld [vmem:[%s756 + $0xa0] sm:$0xff]
    %v778 = vld [vmem:[%s756 + $0xa8] sm:$0xff]
    %v779 = vld [vmem:[%s756 + $0xb0] sm:$0xff]
    %v780 = vld [vmem:[%s756 + $0xb8] sm:$0xff]
    %v781 = vld [vmem:[%s756 + $0xc0] sm:$0xff]
    %v782 = vld [vmem:[%s756 + $0xc8] sm:$0xff]
    %v783 = vld [vmem:[%s756 + $0xd0] sm:$0xff]
    %v784 = vld [vmem:[%s756 + $0xd8] sm:$0xff]
    %v785 = vld [vmem:[%s756 + $0xe0] sm:$0xff]
    %v786 = vld [vmem:[%s756 + $0xe8] sm:$0xff]
    %v787 = vld [vmem:[%s756 + $0xf0] sm:$0xff]
    %v788 = vld [vmem:[%s756 + $0xf8] sm:$0xff]
    %789 = vmatprep.subr.mxu0 %v758
    %790 = vmatpush1.msra.mxu0 %v757
    %791 = vmatprep.subr.mxu0 %v760
    %792 = vmatpush1.msra.mxu0 %v759
    %793 = vmatprep.subr.mxu0 %v762
    %794 = vmatpush1.msra.mxu0 %v761
    %795 = vmatprep.subr.mxu0 %v764
    %796 = vmatpush1.msra.mxu0 %v763
    %797 = vmatprep.subr.mxu0 %v766
    %798 = vmatpush1.msra.mxu0 %v765
    %799 = vmatprep.subr.mxu0 %v768
    %800 = vmatpush1.msra.mxu0 %v767
    %801 = vmatprep.subr.mxu0 %v770
    %802 = vmatpush1.msra.mxu0 %v769
    %803 = vmatprep.subr.mxu0 %v772
    %804 = vmatpush1.msra.mxu0 %v771
    %805 = vmatprep.subr.mxu0 %v774
    %806 = vmatpush1.msra.mxu0 %v773
    %807 = vmatprep.subr.mxu0 %v776
    %808 = vmatpush1.msra.mxu0 %v775
    %809 = vmatprep.subr.mxu0 %v778
    %810 = vmatpush1.msra.mxu0 %v777
    %811 = vmatprep.subr.mxu0 %v780
    %812 = vmatpush1.msra.mxu0 %v779
    %813 = vmatprep.subr.mxu0 %v782
    %814 = vmatpush1.msra.mxu0 %v781
    %815 = vmatprep.subr.mxu0 %v784
    %816 = vmatpush1.msra.mxu0 %v783
    %817 = vmatprep.subr.mxu0 %v786
    %818 = vmatpush1.msra.mxu0 %v785
    %819 = vmatprep.subr.mxu0 %v788
    %820 = vmatpush1.msra.mxu0 %v787
    %821 = vmatprep.subr.mxu0 0.0
    %822 = vmatpush1.msra.mxu0 0.0
    %823 = vmatprep.subr.mxu0 0.0
    %824 = vmatpush1.msra.mxu0 0.0
    %825 = vmatprep.subr.mxu0 0.0
    %826 = vmatpush1.msra.mxu0 0.0
    %827 = vmatprep.subr.mxu0 0.0
    %828 = vmatpush1.msra.mxu0 0.0
    %829 = vmatprep.subr.mxu0 0.0
    %830 = vmatpush1.msra.mxu0 0.0
    %831 = vmatprep.subr.mxu0 0.0
    %832 = vmatpush1.msra.mxu0 0.0
    %833 = vmatprep.subr.mxu0 0.0
    %834 = vmatpush1.msra.mxu0 0.0
    %835 = vmatprep.subr.mxu0 0.0
    %836 = vmatpush1.msra.mxu0 0.0
    %837 = vmatprep.subr.mxu0 0.0
    %838 = vmatpush1.msra.mxu0 0.0
    %839 = vmatprep.subr.mxu0 0.0
    %840 = vmatpush1.msra.mxu0 0.0
    %841 = vmatprep.subr.mxu0 0.0
    %842 = vmatpush1.msra.mxu0 0.0
    %843 = vmatprep.subr.mxu0 0.0
    %844 = vmatpush1.msra.mxu0 0.0
    %845 = vmatprep.subr.mxu0 0.0
    %846 = vmatpush1.msra.mxu0 0.0
    %847 = vmatprep.subr.mxu0 0.0
    %848 = vmatpush1.msra.mxu0 0.0
    %849 = vmatprep.subr.mxu0 0.0
    %850 = vmatpush1.msra.mxu0 0.0
    %851 = vmatprep.subr.mxu0 0.0
    %852 = vmatpush1.msra.mxu0 0.0
    %853 = vmatprep.mubr.f32.mxu0 0.0
    %854 = vmatmul.mubr.f32.gmra.mrb[0].mxu0 %v751
    %v855 = vpop.f32.mrb[0].mxu0
    %v856 = vadd.f32 0.0, %v855
    %v857 = vpop.f32.mrb[0].mxu0
    %v858 = vadd.f32 0.0, %v857
    %859 = vmatprep.mubr.f32.mxu0 0.0
    %860 = vmatmul.mubr.f32.gmra.mrb[0].mxu0 %v752
    %v861 = vpop.f32.mrb[0].mxu0
    %v862 = vadd.f32 0.0, %v861
    %v863 = vpop.f32.mrb[0].mxu0
    %v864 = vadd.f32 0.0, %v863
    %865 = vmatprep.mubr.f32.mxu0 0.0
    %866 = vmatmul.mubr.f32.gmra.mrb[0].mxu0 %v753
    %v867 = vpop.f32.mrb[0].mxu0
    %v868 = vadd.f32 0.0, %v867
    %v869 = vpop.f32.mrb[0].mxu0
    %v870 = vadd.f32 0.0, %v869
    %871 = vmatprep.mubr.f32.mxu0 0.0
    %872 = vmatmul.mubr.f32.gmra.mrb[0].mxu0 %v754
    %v873 = vpop.f32.mrb[0].mxu0
    %v874 = vadd.f32 0.0, %v873
    %v875 = vpop.f32.mrb[0].mxu0
    %v876 = vadd.f32 0.0, %v875
    %877 = vmatprep.mubr.f32.mxu0 0.0
    %878 = vmatmul.mubr.f32.gmra.mrb[0].mxu0 %v755
    %v879 = vpop.f32.mrb[0].mxu0
    %v880 = vadd.f32 0.0, %v879
    %v881 = vpop.f32.mrb[0].mxu0
    %v882 = vadd.f32 0.0, %v881
    %883 = vdwg.mxu0
    %v884 = vadd.f32 %v723, %v856
    %v885 = vadd.f32 %v725, %v858
    %v886 = vadd.f32 %v729, %v862
    %v887 = vadd.f32 %v731, %v864
    %v888 = vadd.f32 %v735, %v868
    %v889 = vadd.f32 %v737, %v870
    %v890 = vadd.f32 %v741, %v874
    %v891 = vadd.f32 %v743, %v876
    %v892 = vadd.f32 %v747, %v880
    %v893 = vadd.f32 %v749, %v882
    %v894 = vld [vmem:[%s4] sm:$0x3]
    %v896 = vlaneseq
    %v897 = vshrl.u32 %v896, 7
    %v898 = vsub.s32 0, %v897
    %v899 = vrot.slane %v894, %v898
    %v900 = vlaneseq
    %v901 = vshrl.u32 %v900, 7
    %v902 = vsub.s32 1, %v901
    %v903 = vrot.slane %v894, %v902
    %v906 = vadd.f32 %v884, %v899
    %v907 = vadd.f32 %v885, %v903
    %v908 = vadd.f32 %v886, %v899
    %v909 = vadd.f32 %v887, %v903
    %v910 = vadd.f32 %v888, %v899
    %v911 = vadd.f32 %v889, %v903
    %v912 = vadd.f32 %v890, %v899
    %v913 = vadd.f32 %v891, %v903
    %v914 = vadd.f32 %v892, %v899
    %v915 = vadd.f32 %v893, %v903
    %v916 = vmax.f32 %v906, 0.0
    %v917 = vmax.f32 %v907, 0.0
    %v918 = vmax.f32 %v908, 0.0
    %v919 = vmax.f32 %v909, 0.0
    %v920 = vmax.f32 %v910, 0.0
    %v921 = vmax.f32 %v911, 0.0
    %v922 = vmax.f32 %v912, 0.0
    %v923 = vmax.f32 %v913, 0.0
    %v924 = vmax.f32 %v914, 0.0
    %v925 = vmax.f32 %v915, 0.0
    %v936 = vrot.slane %v916, 7
    %v937 = vrot.slane %v917, 7
    %v938 = vrot.slane %v918, 7
    %v939 = vsel %vm58, %v936, %v938
    %v940 = vrot.slane %v919, 7
    %v941 = vsel %vm58, %v937, %v940
    %v942 = vrot.slane %v920, 7
    %v943 = vsel %vm58, %v938, %v942
    %v944 = vrot.slane %v921, 7
    %v945 = vsel %vm58, %v940, %v944
    %v946 = vrot.slane %v922, 7
    %v947 = vsel %vm58, %v942, %v946
    %v948 = vrot.slane %v923, 7
    %v949 = vsel %vm58, %v944, %v948
    %v950 = vrot.slane %v924, 7
    %v951 = vsel %vm58, %v946, %v950
    %v952 = vrot.slane %v925, 7
    %v953 = vsel %vm58, %v948, %v952
    %964 = vst [vmem:[#allocation2] sm:$0xfe] %v936
    %965 = vst [vmem:[#allocation2 + $0x8] sm:$0xfe] %v937
    %966 = vst [vmem:[#allocation2 + $0x10] sm:$0xff] %v939
    %967 = vst [vmem:[#allocation2 + $0x18] sm:$0xff] %v941
    %968 = vst [vmem:[#allocation2 + $0x20] sm:$0xff] %v943
    %969 = vst [vmem:[#allocation2 + $0x28] sm:$0xff] %v945
    %970 = vst [vmem:[#allocation2 + $0x30] sm:$0xff] %v947
    %971 = vst [vmem:[#allocation2 + $0x38] sm:$0xff] %v949
    %972 = vst [vmem:[#allocation2 + $0x40] sm:$0x7] %v951
    %973 = vst [vmem:[#allocation2 + $0x48] sm:$0x7] %v953
    %v974 = vlaneseq
    %vm975 = vcmp.ge.s32.totalorder %v974, 0
    %vm976 = vcmp.lt.s32.totalorder %v974, 256
    %vm977 = vmand %vm975, %vm976
    %978 = vst.msk [vmem:[#allocation2] ss:$8 sm:$0x3] %vm977, 0.0
    %979 = vst.msk [vmem:[#allocation2] ss:$8 sm:$0x0] %vm977, 0.0
    %980 = vst [vmem:[#allocation2 + $0x20] sm:$0x6] 0.0
    %981 = vst [vmem:[#allocation2 + $0x28] sm:$0x6] 0.0
    %s982 = scalar_lea.vmem [#allocation2], 67
    %983 = vst.msk [vmem:[%s982] ss:$8 sm:$0x3] %vm977, 0.0
    %984 = vst.msk [vmem:[%s982] ss:$8 sm:$0x0] %vm977, 0.0
    %v985 = vld [vmem:[#allocation2] sm:$0xff]
    %v986 = vld [vmem:[#allocation2 + $0x8] sm:$0xff]
    %v987 = vld [vmem:[#allocation2 + $0x10] sm:$0xff]
    %v988 = vld [vmem:[#allocation2 + $0x18] sm:$0xff]
    %v989 = vld [vmem:[#allocation2 + $0x20] sm:$0xff]
    %v990 = vld [vmem:[#allocation2 + $0x28] sm:$0xff]
    %v991 = vld [vmem:[#allocation2 + $0x30] sm:$0xff]
    %v992 = vld [vmem:[#allocation2 + $0x38] sm:$0xff]
    %v993 = vld [vmem:[#allocation2 + $0x40] sm:$0x3]
    %v994 = vld [vmem:[#allocation2 + $0x48] sm:$0x3]
    %v995 = vld [vmem:[#allocation6] sm:$0xff]
    %v996 = vld [vmem:[#allocation6 + $0x8] sm:$0xff]
    %v997 = vld [vmem:[#allocation6 + $0x10] sm:$0xff]
    %v998 = vld [vmem:[#allocation6 + $0x18] sm:$0xff]
    %v999 = vld [vmem:[#allocation6 + $0x20] sm:$0xff]
    %v1000 = vld [vmem:[#allocation6 + $0x28] sm:$0xff]
    %v1001 = vld [vmem:[#allocation6 + $0x30] sm:$0xff]
    %v1002 = vld [vmem:[#allocation6 + $0x38] sm:$0xff]
    %v1003 = vld [vmem:[#allocation6 + $0x40] sm:$0xff]
    %v1004 = vld [vmem:[#allocation6 + $0x48] sm:$0xff]
    %v1005 = vld [vmem:[#allocation6 + $0x50] sm:$0xff]
    %v1006 = vld [vmem:[#allocation6 + $0x58] sm:$0xff]
    %v1007 = vld [vmem:[#allocation6 + $0x60] sm:$0xff]
    %v1008 = vld [vmem:[#allocation6 + $0x68] sm:$0xff]
    %v1009 = vld [vmem:[#allocation6 + $0x70] sm:$0xff]
    %v1010 = vld [vmem:[#allocation6 + $0x78] sm:$0xff]
    %v1011 = vld [vmem:[#allocation6 + $0x80] sm:$0xff]
    %v1012 = vld [vmem:[#allocation6 + $0x88] sm:$0xff]
    %v1013 = vld [vmem:[#allocation6 + $0x90] sm:$0xff]
    %v1014 = vld [vmem:[#allocation6 + $0x98] sm:$0xff]
    %v1015 = vld [vmem:[#allocation6 + $0xa0] sm:$0xff]
    %v1016 = vld [vmem:[#allocation6 + $0xa8] sm:$0xff]
    %v1017 = vld [vmem:[#allocation6 + $0xb0] sm:$0xff]
    %v1018 = vld [vmem:[#allocation6 + $0xb8] sm:$0xff]
    %v1019 = vld [vmem:[#allocation6 + $0xc0] sm:$0xff]
    %v1020 = vld [vmem:[#allocation6 + $0xc8] sm:$0xff]
    %v1021 = vld [vmem:[#allocation6 + $0xd0] sm:$0xff]
    %v1022 = vld [vmem:[#allocation6 + $0xd8] sm:$0xff]
    %v1023 = vld [vmem:[#allocation6 + $0xe0] sm:$0xff]
    %v1024 = vld [vmem:[#allocation6 + $0xe8] sm:$0xff]
    %v1025 = vld [vmem:[#allocation6 + $0xf0] sm:$0xff]
    %v1026 = vld [vmem:[#allocation6 + $0xf8] sm:$0xff]
    %v1027 = vld [vmem:[#allocation2] sm:$0xfe]
    %v1028 = vld [vmem:[#allocation2 + $0x8] sm:$0xfe]
    %v1029 = vld [vmem:[#allocation2 + $0x40] sm:$0x7]
    %v1030 = vld [vmem:[#allocation2 + $0x48] sm:$0x7]
    %s1031 = scalar_lea.vmem [#allocation6], 256
    %v1032 = vld [vmem:[%s1031] sm:$0xff]
    %v1033 = vld [vmem:[%s1031 + $0x8] sm:$0xff]
    %v1034 = vld [vmem:[%s1031 + $0x10] sm:$0xff]
    %v1035 = vld [vmem:[%s1031 + $0x18] sm:$0xff]
    %v1036 = vld [vmem:[%s1031 + $0x20] sm:$0xff]
    %v1037 = vld [vmem:[%s1031 + $0x28] sm:$0xff]
    %v1038 = vld [vmem:[%s1031 + $0x30] sm:$0xff]
    %v1039 = vld [vmem:[%s1031 + $0x38] sm:$0xff]
    %v1040 = vld [vmem:[%s1031 + $0x40] sm:$0xff]
    %v1041 = vld [vmem:[%s1031 + $0x48] sm:$0xff]
    %v1042 = vld [vmem:[%s1031 + $0x50] sm:$0xff]
    %v1043 = vld [vmem:[%s1031 + $0x58] sm:$0xff]
    %v1044 = vld [vmem:[%s1031 + $0x60] sm:$0xff]
    %v1045 = vld [vmem:[%s1031 + $0x68] sm:$0xff]
    %v1046 = vld [vmem:[%s1031 + $0x70] sm:$0xff]
    %v1047 = vld [vmem:[%s1031 + $0x78] sm:$0xff]
    %v1048 = vld [vmem:[%s1031 + $0x80] sm:$0xff]
    %v1049 = vld [vmem:[%s1031 + $0x88] sm:$0xff]
    %v1050 = vld [vmem:[%s1031 + $0x90] sm:$0xff]
    %v1051 = vld [vmem:[%s1031 + $0x98] sm:$0xff]
    %v1052 = vld [vmem:[%s1031 + $0xa0] sm:$0xff]
    %v1053 = vld [vmem:[%s1031 + $0xa8] sm:$0xff]
    %v1054 = vld [vmem:[%s1031 + $0xb0] sm:$0xff]
    %v1055 = vld [vmem:[%s1031 + $0xb8] sm:$0xff]
    %v1056 = vld [vmem:[%s1031 + $0xc0] sm:$0xff]
    %v1057 = vld [vmem:[%s1031 + $0xc8] sm:$0xff]
    %v1058 = vld [vmem:[%s1031 + $0xd0] sm:$0xff]
    %v1059 = vld [vmem:[%s1031 + $0xd8] sm:$0xff]
    %v1060 = vld [vmem:[%s1031 + $0xe0] sm:$0xff]
    %v1061 = vld [vmem:[%s1031 + $0xe8] sm:$0xff]
    %v1062 = vld [vmem:[%s1031 + $0xf0] sm:$0xff]
    %v1063 = vld [vmem:[%s1031 + $0xf8] sm:$0xff]
    %v1074 = vrot.slane %v1027, 1
    %v1075 = vrot.slane %v987, 1
    %v1076 = vsel %vm121, %v1074, %v1075
    %v1077 = vrot.slane %v1028, 1
    %v1078 = vrot.slane %v988, 1
    %v1079 = vsel %vm121, %v1077, %v1078
    %v1080 = vrot.slane %v989, 1
    %v1081 = vsel %vm121, %v1075, %v1080
    %v1082 = vrot.slane %v990, 1
    %v1083 = vsel %vm121, %v1078, %v1082
    %v1084 = vrot.slane %v991, 1
    %v1085 = vsel %vm121, %v1080, %v1084
    %v1086 = vrot.slane %v992, 1
    %v1087 = vsel %vm121, %v1082, %v1086
    %v1088 = vrot.slane %v1029, 1
    %v1089 = vsel %vm121, %v1084, %v1088
    %v1090 = vrot.slane %v1030, 1
    %v1091 = vsel %vm121, %v1086, %v1090
    %1102 = vmatprep.subr.mxu0 0.0
    %1103 = vmatpush1.msra.mxu0 %v1032
    %1104 = vmatprep.subr.mxu0 0.0
    %1105 = vmatpush1.msra.mxu0 %v1033
    %1106 = vmatprep.subr.mxu0 0.0
    %1107 = vmatpush1.msra.mxu0 %v1034
    %1108 = vmatprep.subr.mxu0 0.0
    %1109 = vmatpush1.msra.mxu0 %v1035
    %1110 = vmatprep.subr.mxu0 0.0
    %1111 = vmatpush1.msra.mxu0 %v1036
    %1112 = vmatprep.subr.mxu0 0.0
    %1113 = vmatpush1.msra.mxu0 %v1037
    %1114 = vmatprep.subr.mxu0 0.0
    %1115 = vmatpush1.msra.mxu0 %v1038
    %1116 = vmatprep.subr.mxu0 0.0
    %1117 = vmatpush1.msra.mxu0 %v1039
    %1118 = vmatprep.subr.mxu0 0.0
    %1119 = vmatpush1.msra.mxu0 %v1040
    %1120 = vmatprep.subr.mxu0 0.0
    %1121 = vmatpush1.msra.mxu0 %v1041
    %1122 = vmatprep.subr.mxu0 0.0
    %1123 = vmatpush1.msra.mxu0 %v1042
    %1124 = vmatprep.subr.mxu0 0.0
    %1125 = vmatpush1.msra.mxu0 %v1043
    %1126 = vmatprep.subr.mxu0 0.0
    %1127 = vmatpush1.msra.mxu0 %v1044
    %1128 = vmatprep.subr.mxu0 0.0
    %1129 = vmatpush1.msra.mxu0 %v1045
    %1130 = vmatprep.subr.mxu0 0.0
    %1131 = vmatpush1.msra.mxu0 %v1046
    %1132 = vmatprep.subr.mxu0 0.0
    %1133 = vmatpush1.msra.mxu0 %v1047
    %1134 = vmatprep.subr.mxu0 0.0
    %1135 = vmatpush1.msra.mxu0 %v1048
    %1136 = vmatprep.subr.mxu0 0.0
    %1137 = vmatpush1.msra.mxu0 %v1049
    %1138 = vmatprep.subr.mxu0 0.0
    %1139 = vmatpush1.msra.mxu0 %v1050
    %1140 = vmatprep.subr.mxu0 0.0
    %1141 = vmatpush1.msra.mxu0 %v1051
    %1142 = vmatprep.subr.mxu0 0.0
    %1143 = vmatpush1.msra.mxu0 %v1052
    %1144 = vmatprep.subr.mxu0 0.0
    %1145 = vmatpush1.msra.mxu0 %v1053
    %1146 = vmatprep.subr.mxu0 0.0
    %1147 = vmatpush1.msra.mxu0 %v1054
    %1148 = vmatprep.subr.mxu0 0.0
    %1149 = vmatpush1.msra.mxu0 %v1055
    %1150 = vmatprep.subr.mxu0 0.0
    %1151 = vmatpush1.msra.mxu0 %v1056
    %1152 = vmatprep.subr.mxu0 0.0
    %1153 = vmatpush1.msra.mxu0 %v1057
    %1154 = vmatprep.subr.mxu0 0.0
    %1155 = vmatpush1.msra.mxu0 %v1058
    %1156 = vmatprep.subr.mxu0 0.0
    %1157 = vmatpush1.msra.mxu0 %v1059
    %1158 = vmatprep.subr.mxu0 0.0
    %1159 = vmatpush1.msra.mxu0 %v1060
    %1160 = vmatprep.subr.mxu0 0.0
    %1161 = vmatpush1.msra.mxu0 %v1061
    %1162 = vmatprep.subr.mxu0 0.0
    %1163 = vmatpush1.msra.mxu0 %v1062
    %1164 = vmatprep.subr.mxu0 0.0
    %1165 = vmatpush1.msra.mxu0 %v1063
    %1166 = vmatprep.mubr.f32.mxu0 %v1079
    %1167 = vmatmul.mubr.f32.gmra.mrb[0].mxu0 %v1076
    %v1168 = vpop.f32.mrb[0].mxu0
    %v1169 = vadd.f32 0.0, %v1168
    %v1170 = vpop.f32.mrb[0].mxu0
    %1171 = vmatprep.mubr.f32.mxu0 %v1083
    %1172 = vmatmul.mubr.f32.gmra.mrb[0].mxu0 %v1081
    %v1173 = vpop.f32.mrb[0].mxu0
    %v1174 = vadd.f32 0.0, %v1173
    %v1175 = vpop.f32.mrb[0].mxu0
    %1176 = vmatprep.mubr.f32.mxu0 %v1087
    %1177 = vmatmul.mubr.f32.gmra.mrb[0].mxu0 %v1085
    %v1178 = vpop.f32.mrb[0].mxu0
    %v1179 = vadd.f32 0.0, %v1178
    %v1180 = vpop.f32.mrb[0].mxu0
    %1181 = vmatprep.mubr.f32.mxu0 %v1091
    %1182 = vmatmul.mubr.f32.gmra.mrb[0].mxu0 %v1089
    %v1183 = vpop.f32.mrb[0].mxu0
    %v1184 = vadd.f32 0.0, %v1183
    %v1185 = vpop.f32.mrb[0].mxu0
    %1186 = vmatprep.mubr.f32.mxu0 %v1090
    %1187 = vmatmul.mubr.f32.gmra.mrb[0].mxu0 %v1088
    %v1188 = vpop.f32.mrb[0].mxu0
    %v1189 = vadd.f32 0.0, %v1188
    %v1190 = vpop.f32.mrb[0].mxu0
    %1191 = vdwg.mxu0
    %1192 = vmatprep.subr.mxu0 0.0
    %1193 = vmatpush1.msra.mxu0 %v995
    %1194 = vmatprep.subr.mxu0 0.0
    %1195 = vmatpush1.msra.mxu0 %v996
    %1196 = vmatprep.subr.mxu0 0.0
    %1197 = vmatpush1.msra.mxu0 %v997
    %1198 = vmatprep.subr.mxu0 0.0
    %1199 = vmatpush1.msra.mxu0 %v998
    %1200 = vmatprep.subr.mxu0 0.0
    %1201 = vmatpush1.msra.mxu0 %v999
    %1202 = vmatprep.subr.mxu0 0.0
    %1203 = vmatpush1.msra.mxu0 %v1000
    %1204 = vmatprep.subr.mxu0 0.0
    %1205 = vmatpush1.msra.mxu0 %v1001
    %1206 = vmatprep.subr.mxu0 0.0
    %1207 = vmatpush1.msra.mxu0 %v1002
    %1208 = vmatprep.subr.mxu0 0.0
    %1209 = vmatpush1.msra.mxu0 %v1003
    %1210 = vmatprep.subr.mxu0 0.0
    %1211 = vmatpush1.msra.mxu0 %v1004
    %1212 = vmatprep.subr.mxu0 0.0
    %1213 = vmatpush1.msra.mxu0 %v1005
    %1214 = vmatprep.subr.mxu0 0.0
    %1215 = vmatpush1.msra.mxu0 %v1006
    %1216 = vmatprep.subr.mxu0 0.0
    %1217 = vmatpush1.msra.mxu0 %v1007
    %1218 = vmatprep.subr.mxu0 0.0
    %1219 = vmatpush1.msra.mxu0 %v1008
    %1220 = vmatprep.subr.mxu0 0.0
    %1221 = vmatpush1.msra.mxu0 %v1009
    %1222 = vmatprep.subr.mxu0 0.0
    %1223 = vmatpush1.msra.mxu0 %v1010
    %1224 = vmatprep.subr.mxu0 0.0
    %1225 = vmatpush1.msra.mxu0 %v1011
    %1226 = vmatprep.subr.mxu0 0.0
    %1227 = vmatpush1.msra.mxu0 %v1012
    %1228 = vmatprep.subr.mxu0 0.0
    %1229 = vmatpush1.msra.mxu0 %v1013
    %1230 = vmatprep.subr.mxu0 0.0
    %1231 = vmatpush1.msra.mxu0 %v1014
    %1232 = vmatprep.subr.mxu0 0.0
    %1233 = vmatpush1.msra.mxu0 %v1015
    %1234 = vmatprep.subr.mxu0 0.0
    %1235 = vmatpush1.msra.mxu0 %v1016
    %1236 = vmatprep.subr.mxu0 0.0
    %1237 = vmatpush1.msra.mxu0 %v1017
    %1238 = vmatprep.subr.mxu0 0.0
    %1239 = vmatpush1.msra.mxu0 %v1018
    %1240 = vmatprep.subr.mxu0 0.0
    %1241 = vmatpush1.msra.mxu0 %v1019
    %1242 = vmatprep.subr.mxu0 0.0
    %1243 = vmatpush1.msra.mxu0 %v1020
    %1244 = vmatprep.subr.mxu0 0.0
    %1245 = vmatpush1.msra.mxu0 %v1021
    %1246 = vmatprep.subr.mxu0 0.0
    %1247 = vmatpush1.msra.mxu0 %v1022
    %1248 = vmatprep.subr.mxu0 0.0
    %1249 = vmatpush1.msra.mxu0 %v1023
    %1250 = vmatprep.subr.mxu0 0.0
    %1251 = vmatpush1.msra.mxu0 %v1024
    %1252 = vmatprep.subr.mxu0 0.0
    %1253 = vmatpush1.msra.mxu0 %v1025
    %1254 = vmatprep.subr.mxu0 0.0
    %1255 = vmatpush1.msra.mxu0 %v1026
    %1256 = vmatprep.mubr.f32.mxu0 %v986
    %1257 = vmatmul.mubr.f32.gmra.mrb[0].mxu0 %v985
    %v1258 = vpop.f32.mrb[0].mxu0
    %v1259 = vadd.f32 %v1169, %v1258
    %v1260 = vpop.f32.mrb[0].mxu0
    %1261 = vmatprep.mubr.f32.mxu0 %v988
    %1262 = vmatmul.mubr.f32.gmra.mrb[0].mxu0 %v987
    %v1263 = vpop.f32.mrb[0].mxu0
    %v1264 = vadd.f32 %v1174, %v1263
    %v1265 = vpop.f32.mrb[0].mxu0
    %1266 = vmatprep.mubr.f32.mxu0 %v990
    %1267 = vmatmul.mubr.f32.gmra.mrb[0].mxu0 %v989
    %v1268 = vpop.f32.mrb[0].mxu0
    %v1269 = vadd.f32 %v1179, %v1268
    %v1270 = vpop.f32.mrb[0].mxu0
    %1271 = vmatprep.mubr.f32.mxu0 %v992
    %1272 = vmatmul.mubr.f32.gmra.mrb[0].mxu0 %v991
    %v1273 = vpop.f32.mrb[0].mxu0
    %v1274 = vadd.f32 %v1184, %v1273
    %v1275 = vpop.f32.mrb[0].mxu0
    %1276 = vmatprep.mubr.f32.mxu0 %v994
    %1277 = vmatmul.mubr.f32.gmra.mrb[0].mxu0 %v993
    %v1278 = vpop.f32.mrb[0].mxu0
    %v1279 = vadd.f32 %v1189, %v1278
    %v1280 = vpop.f32.mrb[0].mxu0
    %1281 = vdwg.mxu0
    %v1282 = vld [vmem:[#allocation2] sm:$0xfc]
    %v1283 = vld [vmem:[#allocation2 + $0x8] sm:$0xfc]
    %v1284 = vld [vmem:[#allocation2 + $0x40] sm:$0xf]
    %v1285 = vld [vmem:[#allocation2 + $0x48] sm:$0xf]
    %s1286 = scalar_lea.vmem [#allocation6], 512
    %v1287 = vld [vmem:[%s1286] sm:$0xff]
    %v1288 = vld [vmem:[%s1286 + $0x8] sm:$0xff]
    %v1289 = vld [vmem:[%s1286 + $0x10] sm:$0xff]
    %v1290 = vld [vmem:[%s1286 + $0x18] sm:$0xff]
    %v1291 = vld [vmem:[%s1286 + $0x20] sm:$0xff]
    %v1292 = vld [vmem:[%s1286 + $0x28] sm:$0xff]
    %v1293 = vld [vmem:[%s1286 + $0x30] sm:$0xff]
    %v1294 = vld [vmem:[%s1286 + $0x38] sm:$0xff]
    %v1295 = vld [vmem:[%s1286 + $0x40] sm:$0xff]
    %v1296 = vld [vmem:[%s1286 + $0x48] sm:$0xff]
    %v1297 = vld [vmem:[%s1286 + $0x50] sm:$0xff]
    %v1298 = vld [vmem:[%s1286 + $0x58] sm:$0xff]
    %v1299 = vld [vmem:[%s1286 + $0x60] sm:$0xff]
    %v1300 = vld [vmem:[%s1286 + $0x68] sm:$0xff]
    %v1301 = vld [vmem:[%s1286 + $0x70] sm:$0xff]
    %v1302 = vld [vmem:[%s1286 + $0x78] sm:$0xff]
    %v1303 = vld [vmem:[%s1286 + $0x80] sm:$0xff]
    %v1304 = vld [vmem:[%s1286 + $0x88] sm:$0xff]
    %v1305 = vld [vmem:[%s1286 + $0x90] sm:$0xff]
    %v1306 = vld [vmem:[%s1286 + $0x98] sm:$0xff]
    %v1307 = vld [vmem:[%s1286 + $0xa0] sm:$0xff]
    %v1308 = vld [vmem:[%s1286 + $0xa8] sm:$0xff]
    %v1309 = vld [vmem:[%s1286 + $0xb0] sm:$0xff]
    %v1310 = vld [vmem:[%s1286 + $0xb8] sm:$0xff]
    %v1311 = vld [vmem:[%s1286 + $0xc0] sm:$0xff]
    %v1312 = vld [vmem:[%s1286 + $0xc8] sm:$0xff]
    %v1313 = vld [vmem:[%s1286 + $0xd0] sm:$0xff]
    %v1314 = vld [vmem:[%s1286 + $0xd8] sm:$0xff]
    %v1315 = vld [vmem:[%s1286 + $0xe0] sm:$0xff]
    %v1316 = vld [vmem:[%s1286 + $0xe8] sm:$0xff]
    %v1317 = vld [vmem:[%s1286 + $0xf0] sm:$0xff]
    %v1318 = vld [vmem:[%s1286 + $0xf8] sm:$0xff]
    %v1323 = vrot.slane %v1282, 2
    %v1324 = vrot.slane %v987, 2
    %v1325 = vsel %vm346, %v1323, %v1324
    %v1326 = vrot.slane %v1283, 2
    %v1327 = vrot.slane %v988, 2
    %v1328 = vsel %vm346, %v1326, %v1327
    %v1329 = vrot.slane %v989, 2
    %v1330 = vsel %vm346, %v1324, %v1329
    %v1331 = vrot.slane %v990, 2
    %v1332 = vsel %vm346, %v1327, %v1331
    %v1333 = vrot.slane %v991, 2
    %v1334 = vsel %vm346, %v1329, %v1333
    %v1335 = vrot.slane %v992, 2
    %v1336 = vsel %vm346, %v1331, %v1335
    %v1337 = vrot.slane %v1284, 2
    %v1338 = vsel %vm346, %v1333, %v1337
    %v1339 = vrot.slane %v1285, 2
    %v1340 = vsel %vm346, %v1335, %v1339
    %1351 = vmatprep.subr.mxu0 0.0
    %1352 = vmatpush1.msra.mxu0 %v1287
    %1353 = vmatprep.subr.mxu0 0.0
    %1354 = vmatpush1.msra.mxu0 %v1288
    %1355 = vmatprep.subr.mxu0 0.0
    %1356 = vmatpush1.msra.mxu0 %v1289
    %1357 = vmatprep.subr.mxu0 0.0
    %1358 = vmatpush1.msra.mxu0 %v1290
    %1359 = vmatprep.subr.mxu0 0.0
    %1360 = vmatpush1.msra.mxu0 %v1291
    %1361 = vmatprep.subr.mxu0 0.0
    %1362 = vmatpush1.msra.mxu0 %v1292
    %1363 = vmatprep.subr.mxu0 0.0
    %1364 = vmatpush1.msra.mxu0 %v1293
    %1365 = vmatprep.subr.mxu0 0.0
    %1366 = vmatpush1.msra.mxu0 %v1294
    %1367 = vmatprep.subr.mxu0 0.0
    %1368 = vmatpush1.msra.mxu0 %v1295
    %1369 = vmatprep.subr.mxu0 0.0
    %1370 = vmatpush1.msra.mxu0 %v1296
    %1371 = vmatprep.subr.mxu0 0.0
    %1372 = vmatpush1.msra.mxu0 %v1297
    %1373 = vmatprep.subr.mxu0 0.0
    %1374 = vmatpush1.msra.mxu0 %v1298
    %1375 = vmatprep.subr.mxu0 0.0
    %1376 = vmatpush1.msra.mxu0 %v1299
    %1377 = vmatprep.subr.mxu0 0.0
    %1378 = vmatpush1.msra.mxu0 %v1300
    %1379 = vmatprep.subr.mxu0 0.0
    %1380 = vmatpush1.msra.mxu0 %v1301
    %1381 = vmatprep.subr.mxu0 0.0
    %1382 = vmatpush1.msra.mxu0 %v1302
    %1383 = vmatprep.subr.mxu0 0.0
    %1384 = vmatpush1.msra.mxu0 %v1303
    %1385 = vmatprep.subr.mxu0 0.0
    %1386 = vmatpush1.msra.mxu0 %v1304
    %1387 = vmatprep.subr.mxu0 0.0
    %1388 = vmatpush1.msra.mxu0 %v1305
    %1389 = vmatprep.subr.mxu0 0.0
    %1390 = vmatpush1.msra.mxu0 %v1306
    %1391 = vmatprep.subr.mxu0 0.0
    %1392 = vmatpush1.msra.mxu0 %v1307
    %1393 = vmatprep.subr.mxu0 0.0
    %1394 = vmatpush1.msra.mxu0 %v1308
    %1395 = vmatprep.subr.mxu0 0.0
    %1396 = vmatpush1.msra.mxu0 %v1309
    %1397 = vmatprep.subr.mxu0 0.0
    %1398 = vmatpush1.msra.mxu0 %v1310
    %1399 = vmatprep.subr.mxu0 0.0
    %1400 = vmatpush1.msra.mxu0 %v1311
    %1401 = vmatprep.subr.mxu0 0.0
    %1402 = vmatpush1.msra.mxu0 %v1312
    %1403 = vmatprep.subr.mxu0 0.0
    %1404 = vmatpush1.msra.mxu0 %v1313
    %1405 = vmatprep.subr.mxu0 0.0
    %1406 = vmatpush1.msra.mxu0 %v1314
    %1407 = vmatprep.subr.mxu0 0.0
    %1408 = vmatpush1.msra.mxu0 %v1315
    %1409 = vmatprep.subr.mxu0 0.0
    %1410 = vmatpush1.msra.mxu0 %v1316
    %1411 = vmatprep.subr.mxu0 0.0
    %1412 = vmatpush1.msra.mxu0 %v1317
    %1413 = vmatprep.subr.mxu0 0.0
    %1414 = vmatpush1.msra.mxu0 %v1318
    %1415 = vmatprep.mubr.f32.mxu0 %v1328
    %1416 = vmatmul.mubr.f32.gmra.mrb[0].mxu0 %v1325
    %v1417 = vpop.f32.mrb[0].mxu0
    %v1418 = vadd.f32 0.0, %v1417
    %v1419 = vpop.f32.mrb[0].mxu0
    %1420 = vmatprep.mubr.f32.mxu0 %v1332
    %1421 = vmatmul.mubr.f32.gmra.mrb[0].mxu0 %v1330
    %v1422 = vpop.f32.mrb[0].mxu0
    %v1423 = vadd.f32 0.0, %v1422
    %v1424 = vpop.f32.mrb[0].mxu0
    %1425 = vmatprep.mubr.f32.mxu0 %v1336
    %1426 = vmatmul.mubr.f32.gmra.mrb[0].mxu0 %v1334
    %v1427 = vpop.f32.mrb[0].mxu0
    %v1428 = vadd.f32 0.0, %v1427
    %v1429 = vpop.f32.mrb[0].mxu0
    %1430 = vmatprep.mubr.f32.mxu0 %v1340
    %1431 = vmatmul.mubr.f32.gmra.mrb[0].mxu0 %v1338
    %v1432 = vpop.f32.mrb[0].mxu0
    %v1433 = vadd.f32 0.0, %v1432
    %v1434 = vpop.f32.mrb[0].mxu0
    %1435 = vmatprep.mubr.f32.mxu0 %v1339
    %1436 = vmatmul.mubr.f32.gmra.mrb[0].mxu0 %v1337
    %v1437 = vpop.f32.mrb[0].mxu0
    %v1438 = vadd.f32 0.0, %v1437
    %v1439 = vpop.f32.mrb[0].mxu0
    %1440 = vdwg.mxu0
    %v1441 = vadd.f32 %v1259, %v1418
    %v1442 = vadd.f32 %v1264, %v1423
    %v1443 = vadd.f32 %v1269, %v1428
    %v1444 = vadd.f32 %v1274, %v1433
    %v1445 = vadd.f32 %v1279, %v1438
    %v1446 = vld [vmem:[%s6] sm:$0x1]
    %v1448 = vlaneseq
    %v1449 = vshrl.u32 %v1448, 7
    %v1450 = vsub.s32 0, %v1449
    %v1451 = vrot.slane %v1446, %v1450
    %v1453 = vadd.f32 %v1441, %v1451
    %v1454 = vadd.f32 %v1442, %v1451
    %v1455 = vadd.f32 %v1443, %v1451
    %v1456 = vadd.f32 %v1444, %v1451
    %v1457 = vadd.f32 %v1445, %v1451
    %1458 = vst [vmem:[%s7] sm:$0xff] %v1453
    %1459 = vst [vmem:[%s7 + $0x8] sm:$0xff] %v1454
    %s1460 = scalar_lea.vmem %s7, 16
    %1461 = vst [vmem:[%s1460 - $0x2] sm:$0xfc] %v1455
    %1462 = vst [vmem:[%s1460 + $0x6] sm:$0xff] %v1456
    %1463 = vst [vmem:[%s1460 + $0xe] sm:$0x3] %v1457
    // Predicated region
    $region38: #{_convscale_forward_impl.1} parent=1 // pred_check
      _
    $region39: #{_convscale_forward_impl.1} parent=1 // pred_check_branch
      %1465 = sbr.rel (0) target = $region41
    $region40: #{_convscale_forward_impl.1} parent=1 // pred_region
      _
    $region41: #{_convscale_forward_impl.1} parent=1 // pred_fallthru
      _
    // Predicated region
    $region42: #{_convscale_forward_impl.1} parent=1 // pred_check
      _
    $region43: #{_convscale_forward_impl.1} parent=1 // pred_check_branch
      %1467 = sbr.rel (0) target = $region45
    $region44: #{_convscale_forward_impl.1} parent=1 // pred_region
      _
    $region45: #{_convscale_forward_impl.1} parent=1 // pred_fallthru
      _
    %1468 = vsyncpa [#allocation5], 1
    %1469 = vsyncpa [#allocation7], 1

</llo_original>
